<compile_context>
chip_gen: v6e
topology: v6e:2x2x1
jax: 0.10.0
libtpu: 0.0.40
codegen_flags: <defaults>
</compile_context>

<pallas_src>
import functools

import jax
import jax.numpy as jnp
from jax.experimental import pallas as pl
from jax.experimental.pallas import tpu as pltpu


LANE = 128  # lane width: all feature dims are zero-padded to this


# ---------------------------------------------------------------------------
# Fused kernel (one grid step = `tile_imgs` whole images):
#   conv(im2col matmul) -> ReLU -> mean-pool (f32 XLU reduce) -> fc -> ReLU
#   -> cluster_projector (Linear + ReLU).  Everything stays in VMEM.
# ---------------------------------------------------------------------------
def _network_kernel(patches_ref, wconv_ref, bconv_ref, wfc_ref, bfc_ref,
                    wproj_ref, bproj_ref, hc_ref, *, tile_imgs, hw):
    # 1) 3x3 conv as ONE lane-dense im2col matmul (bf16 in, f32 accumulate).
    acc = jnp.dot(patches_ref[...], wconv_ref[...],
                  preferred_element_type=jnp.float32)          # (tile*H*W, 128)
    acc = jnp.maximum(acc + bconv_ref[...], 0.0)               # conv bias + ReLU (f32)

    # 2) Global average pool: in-kernel f32 reduction (leading-dim split is
    #    layout-free since H*W is a multiple of 8); scale applied in f32.
    pooled = jnp.sum(acc.reshape(tile_imgs, hw, LANE), axis=1) * (1.0 / hw)

    # 3) Backbone fc -> h (ReLU).  h stays resident in VMEM for the projector.
    h = jnp.dot(pooled.astype(jnp.bfloat16), wfc_ref[...],
                preferred_element_type=jnp.float32)
    h = jnp.maximum(h + bfc_ref[...], 0.0)                     # (tile, 128) f32

    # 4) cluster_projector: Linear(rep_dim, rep_dim) + ReLU -> c.
    c = jnp.dot(h.astype(jnp.bfloat16), wproj_ref[...],
                preferred_element_type=jnp.float32)
    c = jnp.maximum(c + bproj_ref[...], 0.0)                   # (tile, 128) f32

    # Single merged lane-dense output: [h | c], both stores 128-lane aligned.
    hc_ref[:, :LANE] = h
    hc_ref[:, LANE:] = c


def _pad2(w, rows, cols):
    """Zero-pad a 2-D array up to (rows, cols)."""
    return jnp.pad(w, ((0, rows - w.shape[0]), (0, cols - w.shape[1])))


def _pick_tile(n2, hw):
    """Images per grid step: keep the bf16 patches block <= ~8 MiB (VMEM-safe
    with double buffering on v7x's 64 MiB), and divide the batch exactly."""
    per_img = hw * LANE * 2                     # bf16 patch rows per image
    cap = max(1, (8 << 20) // per_img)
    tile = min(n2, cap)
    while n2 % tile:
        tile -= 1
    return tile


# ---------------------------------------------------------------------------
# Network.forward: one fused pallas_call over the concatenated (x_i, x_j) batch.
# ---------------------------------------------------------------------------
@jax.jit
def network_forward(params, x_i, x_j):
    B, cin = x_i.shape[0], x_i.shape[1]
    rep_dim = params["w_fc"].shape[1]
    cmid = params["w_conv"].shape[1]
    assert 9 * cin <= LANE and cmid <= LANE and rep_dim <= LANE

    # --- pack both views into one batch; NCHW -> NHWC, bf16 EARLY -----------
    x = jnp.concatenate([x_i, x_j], axis=0)                    # (2B, C, H, W)
    x = jnp.transpose(x, (0, 2, 3, 1)).astype(jnp.bfloat16)    # NHWC, bf16
    N2, H, W, _ = x.shape
    HW = H * W
    xp = jnp.pad(x, ((0, 0), (1, 1), (1, 1), (0, 0)))          # conv pad=1

    # --- im2col with the lane pad fused into the concatenate ----------------
    cols = [xp[:, kh:kh + H, kw:kw + W, :]
            for kh in range(3) for kw in range(3)]
    if LANE - 9 * cin > 0:
        cols.append(jnp.zeros((N2, H, W, LANE - 9 * cin), jnp.bfloat16))
    patches = jnp.concatenate(cols, axis=-1).reshape(N2 * HW, LANE)

    # --- zero-pad weights/biases to 128 lanes; matmul operands in bf16 ------
    w_conv = _pad2(params["w_conv"], LANE, LANE).astype(jnp.bfloat16)
    b_conv = _pad2(params["b_conv"], 1, LANE)                   # f32 epilogue
    w_fc = _pad2(params["w_fc"], LANE, LANE).astype(jnp.bfloat16)
    b_fc = _pad2(params["b_fc"], 1, LANE)
    w_proj = _pad2(params["w_proj"], LANE, LANE).astype(jnp.bfloat16)
    b_proj = _pad2(params["b_proj"], 1, LANE)

    # --- grid over whole-image row tiles of patches (scales to real ResNet) --
    tile = _pick_tile(N2, HW)
    grid = (N2 // tile,)
    kernel = functools.partial(_network_kernel, tile_imgs=tile, hw=HW)

    flops = 2.0 * N2 * HW * LANE * LANE + 2 * (2.0 * N2 * LANE * LANE)
    bytes_accessed = (patches.size * 2            # bf16 patches
                      + 3 * LANE * LANE * 2       # bf16 weights
                      + 3 * LANE * 4              # f32 biases
                      + N2 * 2 * LANE * 4)        # f32 merged output
    ce = pl.CostEstimate(flops=int(flops), transcendentals=0,
                         bytes_accessed=int(bytes_accessed))

    hc = pl.pallas_call(
        kernel,
        out_shape=jax.ShapeDtypeStruct((N2, 2 * LANE), jnp.float32),
        grid=grid,
        in_specs=[
            pl.BlockSpec((tile * HW, LANE), lambda i: (i, 0)),   # patches tile
            pl.BlockSpec((LANE, LANE), lambda i: (0, 0)),        # w_conv
            pl.BlockSpec((1, LANE), lambda i: (0, 0)),           # b_conv
            pl.BlockSpec((LANE, LANE), lambda i: (0, 0)),        # w_fc
            pl.BlockSpec((1, LANE), lambda i: (0, 0)),           # b_fc
            pl.BlockSpec((LANE, LANE), lambda i: (0, 0)),        # w_proj
            pl.BlockSpec((1, LANE), lambda i: (0, 0)),           # b_proj
        ],
        out_specs=pl.BlockSpec((tile, 2 * LANE), lambda i: (i, 0)),
        compiler_params=pltpu.CompilerParams(
            dimension_semantics=("parallel",)),
        cost_estimate=ce,
    )(patches, w_conv, b_conv, w_fc, b_fc, w_proj, b_proj)

    h = hc[:, :rep_dim]
    c = hc[:, LANE:LANE + rep_dim]
    return c[:B], c[B:], h[:B], h[B:]


def init_params(key, cin, cmid, rep_dim):
    ks = jax.random.split(key, 6)
    scale = 0.1
    return {
        # conv weight flattened to (KH*KW*Cin, Cmid), row index = (kh*3+kw)*Cin + cin
        "w_conv": scale * jax.random.normal(ks[0], (3 * 3 * cin, cmid), jnp.float32),
        "b_conv": scale * jax.random.normal(ks[1], (1, cmid), jnp.float32),
        "w_fc":   scale * jax.random.normal(ks[2], (cmid, rep_dim), jnp.float32),
        "b_fc":   scale * jax.random.normal(ks[3], (1, rep_dim), jnp.float32),
        # cluster_projector: Linear(rep_dim, rep_dim)
        "w_proj": scale * jax.random.normal(ks[4], (rep_dim, rep_dim), jnp.float32),
        "b_proj": scale * jax.random.normal(ks[5], (1, rep_dim), jnp.float32),
    }


if __name__ == "__main__":
    B, C, H, W = 2, 4, 16, 16      # small NCHW inputs
    Cmid, rep_dim = 8, 32          # backbone width / resnet.rep_dim
    # feature_dim exists in the module but the instance_projector is commented out,
    # so it does not appear in forward().

    key = jax.random.PRNGKey(0)
    k_params, k_xi, k_xj = jax.random.split(key, 3)
    params = init_params(k_params, C, Cmid, rep_dim)

    x_i = jax.random.normal(k_xi, (B, C, H, W), jnp.float32)
    x_j = jax.random.normal(k_xj, (B, C, H, W), jnp.float32)

    c_i, c_j, h_i, h_j = network_forward(params, x_i, x_j)
    jax.block_until_ready((c_i, c_j, h_i, h_j))

    assert c_i.shape == (B, rep_dim) and c_j.shape == (B, rep_dim)
    assert h_i.shape == (B, rep_dim) and h_j.shape == (B, rep_dim)
    assert bool(jnp.all(jnp.isfinite(c_i))) and bool(jnp.all(jnp.isfinite(h_i)))
    print("KERNEL_OK")
</pallas_src>

<mosaic_0001>
module attributes {stable_mosaic.version = 11 : i64} {
  func.func @_network_kernel(%arg0: i32, %arg1: memref<1024x128xbf16, #tpu.memory_space<vmem>>, %arg2: memref<128x128xbf16, #tpu.memory_space<vmem>>, %arg3: memref<1x128xf32, #tpu.memory_space<vmem>>, %arg4: memref<128x128xbf16, #tpu.memory_space<vmem>>, %arg5: memref<1x128xf32, #tpu.memory_space<vmem>>, %arg6: memref<128x128xbf16, #tpu.memory_space<vmem>>, %arg7: memref<1x128xf32, #tpu.memory_space<vmem>>, %arg8: memref<4x256xf32, #tpu.memory_space<vmem>>) attributes {dimension_semantics = [#tpu.dimension_semantics<parallel>], iteration_bounds = array<i64: 1>, scalar_prefetch = 0 : i64, scratch_operands = 0 : i64, tpu.core_type = #tpu.core_type<tc>, window_params = [{transform_indices = @transform_0, window_bounds = array<i64: 1024, 128>}, {pipeline_mode = #tpu.pipeline_mode<synchronous>, transform_indices = @transform_1, window_bounds = array<i64: 128, 128>}, {pipeline_mode = #tpu.pipeline_mode<synchronous>, transform_indices = @transform_2, window_bounds = array<i64: 1, 128>}, {pipeline_mode = #tpu.pipeline_mode<synchronous>, transform_indices = @transform_3, window_bounds = array<i64: 128, 128>}, {pipeline_mode = #tpu.pipeline_mode<synchronous>, transform_indices = @transform_4, window_bounds = array<i64: 1, 128>}, {pipeline_mode = #tpu.pipeline_mode<synchronous>, transform_indices = @transform_5, window_bounds = array<i64: 128, 128>}, {pipeline_mode = #tpu.pipeline_mode<synchronous>, transform_indices = @transform_6, window_bounds = array<i64: 1, 128>}, {transform_indices = @transform_7, window_bounds = array<i64: 4, 256>}]} {
    %c0 = arith.constant 0 : index
    %c0_0 = arith.constant 0 : index
    %0 = vector.load %arg1[%c0, %c0_0] : memref<1024x128xbf16, #tpu.memory_space<vmem>>, vector<1024x128xbf16>
    %c0_1 = arith.constant 0 : index
    %c0_2 = arith.constant 0 : index
    %1 = vector.load %arg2[%c0_1, %c0_2] : memref<128x128xbf16, #tpu.memory_space<vmem>>, vector<128x128xbf16>
    %cst = arith.constant dense<0.000000e+00> : vector<1024x128xf32>
    %2 = tpu.matmul %0, %1, %cst {dimension_numbers = #tpu.dot_dimension_numbers<[1], [0], [0], [1], [0, 0, 1, 1], [], []>} : vector<1024x128xbf16>, vector<128x128xbf16>, vector<1024x128xf32> -> vector<1024x128xf32>
    %c0_3 = arith.constant 0 : index
    %c0_4 = arith.constant 0 : index
    %3 = vector.load %arg3[%c0_3, %c0_4] : memref<1x128xf32, #tpu.memory_space<vmem>>, vector<1x128xf32>
    %4 = vector.broadcast %3 : vector<1x128xf32> to vector<1024x128xf32>
    %5 = arith.addf %2, %4 : vector<1024x128xf32>
    %cst_5 = arith.constant 0.000000e+00 : f32
    %6 = vector.broadcast %cst_5 : f32 to vector<1024x128xf32>
    %7 = arith.maximumf %5, %6 : vector<1024x128xf32>
    %8 = vector.shape_cast %7 : vector<1024x128xf32> to vector<4x256x128xf32>
    %cst_6 = arith.constant dense<0.000000e+00> : vector<4x128xf32>
    %9 = vector.multi_reduction <add>, %8, %cst_6 [1] : vector<4x256x128xf32> to vector<4x128xf32>
    %cst_7 = arith.constant 3.906250e-03 : f32
    %10 = vector.broadcast %cst_7 : f32 to vector<4x128xf32>
    %11 = arith.mulf %9, %10 : vector<4x128xf32>
    %12 = arith.truncf %11 : vector<4x128xf32> to vector<4x128xbf16>
    %c0_8 = arith.constant 0 : index
    %c0_9 = arith.constant 0 : index
    %13 = vector.load %arg4[%c0_8, %c0_9] : memref<128x128xbf16, #tpu.memory_space<vmem>>, vector<128x128xbf16>
    %cst_10 = arith.constant dense<0.000000e+00> : vector<4x128xf32>
    %14 = tpu.matmul %12, %13, %cst_10 {dimension_numbers = #tpu.dot_dimension_numbers<[1], [0], [0], [1], [0, 0, 1, 1], [], []>} : vector<4x128xbf16>, vector<128x128xbf16>, vector<4x128xf32> -> vector<4x128xf32>
    %c0_11 = arith.constant 0 : index
    %c0_12 = arith.constant 0 : index
    %15 = vector.load %arg5[%c0_11, %c0_12] : memref<1x128xf32, #tpu.memory_space<vmem>>, vector<1x128xf32>
    %16 = vector.broadcast %15 : vector<1x128xf32> to vector<4x128xf32>
    %17 = arith.addf %14, %16 : vector<4x128xf32>
    %cst_13 = arith.constant 0.000000e+00 : f32
    %18 = vector.broadcast %cst_13 : f32 to vector<4x128xf32>
    %19 = arith.maximumf %17, %18 : vector<4x128xf32>
    %20 = arith.truncf %19 : vector<4x128xf32> to vector<4x128xbf16>
    %c0_14 = arith.constant 0 : index
    %c0_15 = arith.constant 0 : index
    %21 = vector.load %arg6[%c0_14, %c0_15] : memref<128x128xbf16, #tpu.memory_space<vmem>>, vector<128x128xbf16>
    %cst_16 = arith.constant dense<0.000000e+00> : vector<4x128xf32>
    %22 = tpu.matmul %20, %21, %cst_16 {dimension_numbers = #tpu.dot_dimension_numbers<[1], [0], [0], [1], [0, 0, 1, 1], [], []>} : vector<4x128xbf16>, vector<128x128xbf16>, vector<4x128xf32> -> vector<4x128xf32>
    %c0_17 = arith.constant 0 : index
    %c0_18 = arith.constant 0 : index
    %23 = vector.load %arg7[%c0_17, %c0_18] : memref<1x128xf32, #tpu.memory_space<vmem>>, vector<1x128xf32>
    %24 = vector.broadcast %23 : vector<1x128xf32> to vector<4x128xf32>
    %25 = arith.addf %22, %24 : vector<4x128xf32>
    %cst_19 = arith.constant 0.000000e+00 : f32
    %26 = vector.broadcast %cst_19 : f32 to vector<4x128xf32>
    %27 = arith.maximumf %25, %26 : vector<4x128xf32>
    %c0_20 = arith.constant 0 : index
    %c0_21 = arith.constant 0 : index
    %28 = vector.load %arg8[%c0_20, %c0_21] : memref<4x256xf32, #tpu.memory_space<vmem>>, vector<4x128xf32>
    tpu.vector_store %arg8[%c0_20, %c0_21], %19 {strides = array<i32>} : memref<4x256xf32, #tpu.memory_space<vmem>>, vector<4x128xf32>,
    %c0_22 = arith.constant 0 : index
    %c128 = arith.constant 128 : index
    %29 = vector.load %arg8[%c0_22, %c128] : memref<4x256xf32, #tpu.memory_space<vmem>>, vector<4x128xf32>
    tpu.vector_store %arg8[%c0_22, %c128], %27 {strides = array<i32>} : memref<4x256xf32, #tpu.memory_space<vmem>>, vector<4x128xf32>,
    return
  }
  func.func @transform_0(%arg0: i32) -> (i32, i32) {
    %c0_i32 = arith.constant 0 : i32
    %c0_i32_0 = arith.constant 0 : i32
    return %arg0, %c0_i32 : i32, i32
  }
  func.func @transform_1(%arg0: i32) -> (i32, i32) {
    %c0_i32 = arith.constant 0 : i32
    %c0_i32_0 = arith.constant 0 : i32
    %c0_i32_1 = arith.constant 0 : i32
    return %c0_i32, %c0_i32_0 : i32, i32
  }
  func.func @transform_2(%arg0: i32) -> (i32, i32) {
    %c0_i32 = arith.constant 0 : i32
    %c0_i32_0 = arith.constant 0 : i32
    %c0_i32_1 = arith.constant 0 : i32
    return %c0_i32, %c0_i32_0 : i32, i32
  }
  func.func @transform_3(%arg0: i32) -> (i32, i32) {
    %c0_i32 = arith.constant 0 : i32
    %c0_i32_0 = arith.constant 0 : i32
    %c0_i32_1 = arith.constant 0 : i32
    return %c0_i32, %c0_i32_0 : i32, i32
  }
  func.func @transform_4(%arg0: i32) -> (i32, i32) {
    %c0_i32 = arith.constant 0 : i32
    %c0_i32_0 = arith.constant 0 : i32
    %c0_i32_1 = arith.constant 0 : i32
    return %c0_i32, %c0_i32_0 : i32, i32
  }
  func.func @transform_5(%arg0: i32) -> (i32, i32) {
    %c0_i32 = arith.constant 0 : i32
    %c0_i32_0 = arith.constant 0 : i32
    %c0_i32_1 = arith.constant 0 : i32
    return %c0_i32, %c0_i32_0 : i32, i32
  }
  func.func @transform_6(%arg0: i32) -> (i32, i32) {
    %c0_i32 = arith.constant 0 : i32
    %c0_i32_0 = arith.constant 0 : i32
    %c0_i32_1 = arith.constant 0 : i32
    return %c0_i32, %c0_i32_0 : i32, i32
  }
  func.func @transform_7(%arg0: i32) -> (i32, i32) {
    %c0_i32 = arith.constant 0 : i32
    %c0_i32_0 = arith.constant 0 : i32
    return %arg0, %c0_i32 : i32, i32
  }
}

</mosaic_0001>

<llo_original>
// kernel: network_forward.1
$region0: #{network_forward.1}
  #allocation0 [shape = 'u32[]', space=smem, size = 0x4, offset = 0x4, fixed_abs, tag = 'smem constant byte address 0x4 - core index']
  #allocation1 [shape = 'u32[144,128]{1,0:T(1,128)}', space=vmem, size = 0x12000, scoped, tag = 'internal scratch']
  %s0 = inlined_call_operand.vmem [shape: bf16[1024,128], index: 0, kind: input, shape index: {}]
  %s1 = inlined_call_operand.vmem [shape: bf16[128,128], index: 1, kind: input, shape index: {}]
  %s2 = inlined_call_operand.vmem [shape: f32[1,128], index: 2, kind: input, shape index: {}]
  %s3 = inlined_call_operand.vmem [shape: bf16[128,128], index: 3, kind: input, shape index: {}]
  %s4 = inlined_call_operand.vmem [shape: f32[1,128], index: 4, kind: input, shape index: {}]
  %s5 = inlined_call_operand.vmem [shape: bf16[128,128], index: 5, kind: input, shape index: {}]
  %s6 = inlined_call_operand.vmem [shape: f32[1,128], index: 6, kind: input, shape index: {}]
  %s7 = inlined_call_operand.vmem [shape: f32[4,256], index: 7, kind: output, shape index: {}]
  %s8 = sld [smem:[#allocation0]]
  $region38: #{network_forward.1} parent=0
    _
  %s10 = ssub.s32 1, %s8
  %s11 = scalar_select 0, %s10, %s8
  // Predicated region
  $region2: #{network_forward.1} parent=0 // pred_check
    _
  $region3: #{network_forward.1} parent=0 // pred_check_branch
    %13 = sbr.rel (0) target = $region5
  $region4: #{network_forward.1} parent=0 // pred_region
    _
  $region5: #{network_forward.1} parent=0 // pred_fallthru
    _
  // Predicated region
  $region6: #{network_forward.1} parent=0 // pred_check
    _
  $region7: #{network_forward.1} parent=0 // pred_check_branch
    %15 = sbr.rel (0) target = $region9
  $region8: #{network_forward.1} parent=0 // pred_region
    _
  $region9: #{network_forward.1} parent=0 // pred_fallthru
    _
  // Predicated region
  $region10: #{network_forward.1} parent=0 // pred_check
    _
  $region11: #{network_forward.1} parent=0 // pred_check_branch
    %17 = sbr.rel (0) target = $region13
  $region12: #{network_forward.1} parent=0 // pred_region
    _
  $region13: #{network_forward.1} parent=0 // pred_fallthru
    _
  // Predicated region
  $region14: #{network_forward.1} parent=0 // pred_check
    _
  $region15: #{network_forward.1} parent=0 // pred_check_branch
    %19 = sbr.rel (0) target = $region17
  $region16: #{network_forward.1} parent=0 // pred_region
    _
  $region17: #{network_forward.1} parent=0 // pred_fallthru
    _
  // Predicated region
  $region18: #{network_forward.1} parent=0 // pred_check
    _
  $region19: #{network_forward.1} parent=0 // pred_check_branch
    %21 = sbr.rel (0) target = $region21
  $region20: #{network_forward.1} parent=0 // pred_region
    _
  $region21: #{network_forward.1} parent=0 // pred_fallthru
    _
  // Predicated region
  $region22: #{network_forward.1} parent=0 // pred_check
    _
  $region23: #{network_forward.1} parent=0 // pred_check_branch
    %23 = sbr.rel (0) target = $region25
  $region24: #{network_forward.1} parent=0 // pred_region
    _
  $region25: #{network_forward.1} parent=0 // pred_fallthru
    _
  // Predicated region
  $region26: #{network_forward.1} parent=0 // pred_check
    _
  $region27: #{network_forward.1} parent=0 // pred_check_branch
    %25 = sbr.rel (0) target = $region29
  $region28: #{network_forward.1} parent=0 // pred_region
    _
  $region29: #{network_forward.1} parent=0 // pred_fallthru
    _
  %v27 = vld [vmem:[%s0] sm:$0xf]
  %v28 = vld [vmem:[%s0 + $0x4] sm:$0xf]
  %v29 = vld [vmem:[%s0 + $0x8] sm:$0xf]
  %v30 = vld [vmem:[%s0 + $0xc] sm:$0xf]
  %v31 = vld [vmem:[%s0 + $0x10] sm:$0xf]
  %v32 = vld [vmem:[%s0 + $0x14] sm:$0xf]
  %v33 = vld [vmem:[%s0 + $0x18] sm:$0xf]
  %v34 = vld [vmem:[%s0 + $0x1c] sm:$0xf]
  %v35 = vld [vmem:[%s0 + $0x20] sm:$0xf]
  %v36 = vld [vmem:[%s0 + $0x24] sm:$0xf]
  %v37 = vld [vmem:[%s0 + $0x28] sm:$0xf]
  %v38 = vld [vmem:[%s0 + $0x2c] sm:$0xf]
  %v39 = vld [vmem:[%s0 + $0x30] sm:$0xf]
  %v40 = vld [vmem:[%s0 + $0x34] sm:$0xf]
  %v41 = vld [vmem:[%s0 + $0x38] sm:$0xf]
  %v42 = vld [vmem:[%s0 + $0x3c] sm:$0xf]
  %v43 = vld [vmem:[%s0 + $0x40] sm:$0xf]
  %v44 = vld [vmem:[%s0 + $0x44] sm:$0xf]
  %v45 = vld [vmem:[%s0 + $0x48] sm:$0xf]
  %v46 = vld [vmem:[%s0 + $0x4c] sm:$0xf]
  %v47 = vld [vmem:[%s0 + $0x50] sm:$0xf]
  %v48 = vld [vmem:[%s0 + $0x54] sm:$0xf]
  %v49 = vld [vmem:[%s0 + $0x58] sm:$0xf]
  %v50 = vld [vmem:[%s0 + $0x5c] sm:$0xf]
  %v51 = vld [vmem:[%s0 + $0x60] sm:$0xf]
  %v52 = vld [vmem:[%s0 + $0x64] sm:$0xf]
  %v53 = vld [vmem:[%s0 + $0x68] sm:$0xf]
  %v54 = vld [vmem:[%s0 + $0x6c] sm:$0xf]
  %v55 = vld [vmem:[%s0 + $0x70] sm:$0xf]
  %v56 = vld [vmem:[%s0 + $0x74] sm:$0xf]
  %v57 = vld [vmem:[%s0 + $0x78] sm:$0xf]
  %v58 = vld [vmem:[%s0 + $0x7c] sm:$0xf]
  %v59 = vld [vmem:[%s0 + $0x80] sm:$0xf]
  %v60 = vld [vmem:[%s0 + $0x84] sm:$0xf]
  %v61 = vld [vmem:[%s0 + $0x88] sm:$0xf]
  %v62 = vld [vmem:[%s0 + $0x8c] sm:$0xf]
  %v63 = vld [vmem:[%s0 + $0x90] sm:$0xf]
  %v64 = vld [vmem:[%s0 + $0x94] sm:$0xf]
  %v65 = vld [vmem:[%s0 + $0x98] sm:$0xf]
  %v66 = vld [vmem:[%s0 + $0x9c] sm:$0xf]
  %v67 = vld [vmem:[%s0 + $0xa0] sm:$0xf]
  %v68 = vld [vmem:[%s0 + $0xa4] sm:$0xf]
  %v69 = vld [vmem:[%s0 + $0xa8] sm:$0xf]
  %v70 = vld [vmem:[%s0 + $0xac] sm:$0xf]
  %v71 = vld [vmem:[%s0 + $0xb0] sm:$0xf]
  %v72 = vld [vmem:[%s0 + $0xb4] sm:$0xf]
  %v73 = vld [vmem:[%s0 + $0xb8] sm:$0xf]
  %v74 = vld [vmem:[%s0 + $0xbc] sm:$0xf]
  %v75 = vld [vmem:[%s0 + $0xc0] sm:$0xf]
  %v76 = vld [vmem:[%s0 + $0xc4] sm:$0xf]
  %v77 = vld [vmem:[%s0 + $0xc8] sm:$0xf]
  %v78 = vld [vmem:[%s0 + $0xcc] sm:$0xf]
  %v79 = vld [vmem:[%s0 + $0xd0] sm:$0xf]
  %v80 = vld [vmem:[%s0 + $0xd4] sm:$0xf]
  %v81 = vld [vmem:[%s0 + $0xd8] sm:$0xf]
  %v82 = vld [vmem:[%s0 + $0xdc] sm:$0xf]
  %v83 = vld [vmem:[%s0 + $0xe0] sm:$0xf]
  %v84 = vld [vmem:[%s0 + $0xe4] sm:$0xf]
  %v85 = vld [vmem:[%s0 + $0xe8] sm:$0xf]
  %v86 = vld [vmem:[%s0 + $0xec] sm:$0xf]
  %v87 = vld [vmem:[%s0 + $0xf0] sm:$0xf]
  %v88 = vld [vmem:[%s0 + $0xf4] sm:$0xf]
  %v89 = vld [vmem:[%s0 + $0xf8] sm:$0xf]
  %v90 = vld [vmem:[%s0 + $0xfc] sm:$0xf]
  %v91 = vld [vmem:[%s0 + $0x100] sm:$0xf]
  %v92 = vld [vmem:[%s0 + $0x104] sm:$0xf]
  %v93 = vld [vmem:[%s0 + $0x108] sm:$0xf]
  %v94 = vld [vmem:[%s0 + $0x10c] sm:$0xf]
  %v95 = vld [vmem:[%s0 + $0x110] sm:$0xf]
  %v96 = vld [vmem:[%s0 + $0x114] sm:$0xf]
  %v97 = vld [vmem:[%s0 + $0x118] sm:$0xf]
  %v98 = vld [vmem:[%s0 + $0x11c] sm:$0xf]
  %v99 = vld [vmem:[%s0 + $0x120] sm:$0xf]
  %v100 = vld [vmem:[%s0 + $0x124] sm:$0xf]
  %v101 = vld [vmem:[%s0 + $0x128] sm:$0xf]
  %v102 = vld [vmem:[%s0 + $0x12c] sm:$0xf]
  %v103 = vld [vmem:[%s0 + $0x130] sm:$0xf]
  %v104 = vld [vmem:[%s0 + $0x134] sm:$0xf]
  %v105 = vld [vmem:[%s0 + $0x138] sm:$0xf]
  %v106 = vld [vmem:[%s0 + $0x13c] sm:$0xf]
  %v107 = vld [vmem:[%s0 + $0x140] sm:$0xf]
  %v108 = vld [vmem:[%s0 + $0x144] sm:$0xf]
  %v109 = vld [vmem:[%s0 + $0x148] sm:$0xf]
  %v110 = vld [vmem:[%s0 + $0x14c] sm:$0xf]
  %v111 = vld [vmem:[%s0 + $0x150] sm:$0xf]
  %v112 = vld [vmem:[%s0 + $0x154] sm:$0xf]
  %v113 = vld [vmem:[%s0 + $0x158] sm:$0xf]
  %v114 = vld [vmem:[%s0 + $0x15c] sm:$0xf]
  %v115 = vld [vmem:[%s0 + $0x160] sm:$0xf]
  %v116 = vld [vmem:[%s0 + $0x164] sm:$0xf]
  %v117 = vld [vmem:[%s0 + $0x168] sm:$0xf]
  %v118 = vld [vmem:[%s0 + $0x16c] sm:$0xf]
  %v119 = vld [vmem:[%s0 + $0x170] sm:$0xf]
  %v120 = vld [vmem:[%s0 + $0x174] sm:$0xf]
  %v121 = vld [vmem:[%s0 + $0x178] sm:$0xf]
  %v122 = vld [vmem:[%s0 + $0x17c] sm:$0xf]
  %v123 = vld [vmem:[%s0 + $0x180] sm:$0xf]
  %v124 = vld [vmem:[%s0 + $0x184] sm:$0xf]
  %v125 = vld [vmem:[%s0 + $0x188] sm:$0xf]
  %v126 = vld [vmem:[%s0 + $0x18c] sm:$0xf]
  %v127 = vld [vmem:[%s0 + $0x190] sm:$0xf]
  %v128 = vld [vmem:[%s0 + $0x194] sm:$0xf]
  %v129 = vld [vmem:[%s0 + $0x198] sm:$0xf]
  %v130 = vld [vmem:[%s0 + $0x19c] sm:$0xf]
  %v131 = vld [vmem:[%s0 + $0x1a0] sm:$0xf]
  %v132 = vld [vmem:[%s0 + $0x1a4] sm:$0xf]
  %v133 = vld [vmem:[%s0 + $0x1a8] sm:$0xf]
  %v134 = vld [vmem:[%s0 + $0x1ac] sm:$0xf]
  %v135 = vld [vmem:[%s0 + $0x1b0] sm:$0xf]
  %v136 = vld [vmem:[%s0 + $0x1b4] sm:$0xf]
  %v137 = vld [vmem:[%s0 + $0x1b8] sm:$0xf]
  %v138 = vld [vmem:[%s0 + $0x1bc] sm:$0xf]
  %v139 = vld [vmem:[%s0 + $0x1c0] sm:$0xf]
  %v140 = vld [vmem:[%s0 + $0x1c4] sm:$0xf]
  %v141 = vld [vmem:[%s0 + $0x1c8] sm:$0xf]
  %v142 = vld [vmem:[%s0 + $0x1cc] sm:$0xf]
  %v143 = vld [vmem:[%s0 + $0x1d0] sm:$0xf]
  %v144 = vld [vmem:[%s0 + $0x1d4] sm:$0xf]
  %v145 = vld [vmem:[%s0 + $0x1d8] sm:$0xf]
  %v146 = vld [vmem:[%s0 + $0x1dc] sm:$0xf]
  %v147 = vld [vmem:[%s0 + $0x1e0] sm:$0xf]
  %v148 = vld [vmem:[%s0 + $0x1e4] sm:$0xf]
  %v149 = vld [vmem:[%s0 + $0x1e8] sm:$0xf]
  %v150 = vld [vmem:[%s0 + $0x1ec] sm:$0xf]
  %v151 = vld [vmem:[%s0 + $0x1f0] sm:$0xf]
  %v152 = vld [vmem:[%s0 + $0x1f4] sm:$0xf]
  %v153 = vld [vmem:[%s0 + $0x1f8] sm:$0xf]
  %v154 = vld [vmem:[%s0 + $0x1fc] sm:$0xf]
  %v155 = vld [vmem:[%s1] sm:$0xf]
  %v156 = vld [vmem:[%s1 + $0x4] sm:$0xf]
  %v157 = vld [vmem:[%s1 + $0x8] sm:$0xf]
  %v158 = vld [vmem:[%s1 + $0xc] sm:$0xf]
  %v159 = vld [vmem:[%s1 + $0x10] sm:$0xf]
  %v160 = vld [vmem:[%s1 + $0x14] sm:$0xf]
  %v161 = vld [vmem:[%s1 + $0x18] sm:$0xf]
  %v162 = vld [vmem:[%s1 + $0x1c] sm:$0xf]
  %v163 = vld [vmem:[%s1 + $0x20] sm:$0xf]
  %v164 = vld [vmem:[%s1 + $0x24] sm:$0xf]
  %v165 = vld [vmem:[%s1 + $0x28] sm:$0xf]
  %v166 = vld [vmem:[%s1 + $0x2c] sm:$0xf]
  %v167 = vld [vmem:[%s1 + $0x30] sm:$0xf]
  %v168 = vld [vmem:[%s1 + $0x34] sm:$0xf]
  %v169 = vld [vmem:[%s1 + $0x38] sm:$0xf]
  %v170 = vld [vmem:[%s1 + $0x3c] sm:$0xf]
  %v171 = vld [vmem:[%s2] sm:$0x1]
  %v173 = vlaneseq
  %v174 = vshrl.u32 %v173, 7
  %v175 = vsub.s32 0, %v174
  %v176 = vrot.slane %v171, %v175
  %v306 = vunpack.c.l.b16 %v27
  %v307 = vunpack.c.l.b16 %v28
  %v308 = vunpack.c.l.b16 %v29
  %v309 = vunpack.c.l.b16 %v30
  %v310 = vunpack.c.l.b16 %v31
  %v311 = vunpack.c.l.b16 %v32
  %v312 = vunpack.c.l.b16 %v33
  %v313 = vunpack.c.l.b16 %v34
  %v314 = vunpack.c.l.b16 %v35
  %v315 = vunpack.c.l.b16 %v36
  %v316 = vunpack.c.l.b16 %v37
  %v317 = vunpack.c.l.b16 %v38
  %v318 = vunpack.c.l.b16 %v39
  %v319 = vunpack.c.l.b16 %v40
  %v320 = vunpack.c.l.b16 %v41
  %v321 = vunpack.c.l.b16 %v42
  %v322 = vunpack.c.l.b16 %v43
  %v323 = vunpack.c.l.b16 %v44
  %v324 = vunpack.c.l.b16 %v45
  %v325 = vunpack.c.l.b16 %v46
  %v326 = vunpack.c.l.b16 %v47
  %v327 = vunpack.c.l.b16 %v48
  %v328 = vunpack.c.l.b16 %v49
  %v329 = vunpack.c.l.b16 %v50
  %v330 = vunpack.c.l.b16 %v51
  %v331 = vunpack.c.l.b16 %v52
  %v332 = vunpack.c.l.b16 %v53
  %v333 = vunpack.c.l.b16 %v54
  %v334 = vunpack.c.l.b16 %v55
  %v335 = vunpack.c.l.b16 %v56
  %v336 = vunpack.c.l.b16 %v57
  %v337 = vunpack.c.l.b16 %v58
  %v338 = vunpack.c.l.b16 %v59
  %v339 = vunpack.c.l.b16 %v60
  %v340 = vunpack.c.l.b16 %v61
  %v341 = vunpack.c.l.b16 %v62
  %v342 = vunpack.c.l.b16 %v63
  %v343 = vunpack.c.l.b16 %v64
  %v344 = vunpack.c.l.b16 %v65
  %v345 = vunpack.c.l.b16 %v66
  %v346 = vunpack.c.l.b16 %v67
  %v347 = vunpack.c.l.b16 %v68
  %v348 = vunpack.c.l.b16 %v69
  %v349 = vunpack.c.l.b16 %v70
  %v350 = vunpack.c.l.b16 %v71
  %v351 = vunpack.c.l.b16 %v72
  %v352 = vunpack.c.l.b16 %v73
  %v353 = vunpack.c.l.b16 %v74
  %v354 = vunpack.c.l.b16 %v75
  %v355 = vunpack.c.l.b16 %v76
  %v356 = vunpack.c.l.b16 %v77
  %v357 = vunpack.c.l.b16 %v78
  %v358 = vunpack.c.l.b16 %v79
  %v359 = vunpack.c.l.b16 %v80
  %v360 = vunpack.c.l.b16 %v81
  %v361 = vunpack.c.l.b16 %v82
  %v362 = vunpack.c.l.b16 %v83
  %v363 = vunpack.c.l.b16 %v84
  %v364 = vunpack.c.l.b16 %v85
  %v365 = vunpack.c.l.b16 %v86
  %v366 = vunpack.c.l.b16 %v87
  %v367 = vunpack.c.l.b16 %v88
  %v368 = vunpack.c.l.b16 %v89
  %v369 = vunpack.c.l.b16 %v90
  %v370 = vunpack.c.l.b16 %v91
  %v371 = vunpack.c.l.b16 %v92
  %v372 = vunpack.c.l.b16 %v93
  %v373 = vunpack.c.l.b16 %v94
  %v374 = vunpack.c.l.b16 %v95
  %v375 = vunpack.c.l.b16 %v96
  %v376 = vunpack.c.l.b16 %v97
  %v377 = vunpack.c.l.b16 %v98
  %v378 = vunpack.c.l.b16 %v99
  %v379 = vunpack.c.l.b16 %v100
  %v380 = vunpack.c.l.b16 %v101
  %v381 = vunpack.c.l.b16 %v102
  %v382 = vunpack.c.l.b16 %v103
  %v383 = vunpack.c.l.b16 %v104
  %v384 = vunpack.c.l.b16 %v105
  %v385 = vunpack.c.l.b16 %v106
  %v386 = vunpack.c.l.b16 %v107
  %v387 = vunpack.c.l.b16 %v108
  %v388 = vunpack.c.l.b16 %v109
  %v389 = vunpack.c.l.b16 %v110
  %v390 = vunpack.c.l.b16 %v111
  %v391 = vunpack.c.l.b16 %v112
  %v392 = vunpack.c.l.b16 %v113
  %v393 = vunpack.c.l.b16 %v114
  %v394 = vunpack.c.l.b16 %v115
  %v395 = vunpack.c.l.b16 %v116
  %v396 = vunpack.c.l.b16 %v117
  %v397 = vunpack.c.l.b16 %v118
  %v398 = vunpack.c.l.b16 %v119
  %v399 = vunpack.c.l.b16 %v120
  %v400 = vunpack.c.l.b16 %v121
  %v401 = vunpack.c.l.b16 %v122
  %v402 = vunpack.c.l.b16 %v123
  %v403 = vunpack.c.l.b16 %v124
  %v404 = vunpack.c.l.b16 %v125
  %v405 = vunpack.c.l.b16 %v126
  %v406 = vunpack.c.l.b16 %v127
  %v407 = vunpack.c.l.b16 %v128
  %v408 = vunpack.c.l.b16 %v129
  %v409 = vunpack.c.l.b16 %v130
  %v410 = vunpack.c.l.b16 %v131
  %v411 = vunpack.c.l.b16 %v132
  %v412 = vunpack.c.l.b16 %v133
  %v413 = vunpack.c.l.b16 %v134
  %v414 = vunpack.c.l.b16 %v135
  %v415 = vunpack.c.l.b16 %v136
  %v416 = vunpack.c.l.b16 %v137
  %v417 = vunpack.c.l.b16 %v138
  %v418 = vunpack.c.l.b16 %v139
  %v419 = vunpack.c.l.b16 %v140
  %v420 = vunpack.c.l.b16 %v141
  %v421 = vunpack.c.l.b16 %v142
  %v422 = vunpack.c.l.b16 %v143
  %v423 = vunpack.c.l.b16 %v144
  %v424 = vunpack.c.l.b16 %v145
  %v425 = vunpack.c.l.b16 %v146
  %v426 = vunpack.c.l.b16 %v147
  %v427 = vunpack.c.l.b16 %v148
  %v428 = vunpack.c.l.b16 %v149
  %v429 = vunpack.c.l.b16 %v150
  %v430 = vunpack.c.l.b16 %v151
  %v431 = vunpack.c.l.b16 %v152
  %v432 = vunpack.c.l.b16 %v153
  %v433 = vunpack.c.l.b16 %v154
  %v434 = vpack.c.b16 %v307, %v306
  %v435 = vpack.c.b16 %v309, %v308
  %v436 = vpack.c.b16 %v311, %v310
  %v437 = vpack.c.b16 %v313, %v312
  %v438 = vpack.c.b16 %v315, %v314
  %v439 = vpack.c.b16 %v317, %v316
  %v440 = vpack.c.b16 %v319, %v318
  %v441 = vpack.c.b16 %v321, %v320
  %v442 = vpack.c.b16 %v323, %v322
  %v443 = vpack.c.b16 %v325, %v324
  %v444 = vpack.c.b16 %v327, %v326
  %v445 = vpack.c.b16 %v329, %v328
  %v446 = vpack.c.b16 %v331, %v330
  %v447 = vpack.c.b16 %v333, %v332
  %v448 = vpack.c.b16 %v335, %v334
  %v449 = vpack.c.b16 %v337, %v336
  %v450 = vpack.c.b16 %v339, %v338
  %v451 = vpack.c.b16 %v341, %v340
  %v452 = vpack.c.b16 %v343, %v342
  %v453 = vpack.c.b16 %v345, %v344
  %v454 = vpack.c.b16 %v347, %v346
  %v455 = vpack.c.b16 %v349, %v348
  %v456 = vpack.c.b16 %v351, %v350
  %v457 = vpack.c.b16 %v353, %v352
  %v458 = vpack.c.b16 %v355, %v354
  %v459 = vpack.c.b16 %v357, %v356
  %v460 = vpack.c.b16 %v359, %v358
  %v461 = vpack.c.b16 %v361, %v360
  %v462 = vpack.c.b16 %v363, %v362
  %v463 = vpack.c.b16 %v365, %v364
  %v464 = vpack.c.b16 %v367, %v366
  %v465 = vpack.c.b16 %v369, %v368
  %v466 = vpack.c.b16 %v371, %v370
  %v467 = vpack.c.b16 %v373, %v372
  %v468 = vpack.c.b16 %v375, %v374
  %v469 = vpack.c.b16 %v377, %v376
  %v470 = vpack.c.b16 %v379, %v378
  %v471 = vpack.c.b16 %v381, %v380
  %v472 = vpack.c.b16 %v383, %v382
  %v473 = vpack.c.b16 %v385, %v384
  %v474 = vpack.c.b16 %v387, %v386
  %v475 = vpack.c.b16 %v389, %v388
  %v476 = vpack.c.b16 %v391, %v390
  %v477 = vpack.c.b16 %v393, %v392
  %v478 = vpack.c.b16 %v395, %v394
  %v479 = vpack.c.b16 %v397, %v396
  %v480 = vpack.c.b16 %v399, %v398
  %v481 = vpack.c.b16 %v401, %v400
  %v482 = vpack.c.b16 %v403, %v402
  %v483 = vpack.c.b16 %v405, %v404
  %v484 = vpack.c.b16 %v407, %v406
  %v485 = vpack.c.b16 %v409, %v408
  %v486 = vpack.c.b16 %v411, %v410
  %v487 = vpack.c.b16 %v413, %v412
  %v488 = vpack.c.b16 %v415, %v414
  %v489 = vpack.c.b16 %v417, %v416
  %v490 = vpack.c.b16 %v419, %v418
  %v491 = vpack.c.b16 %v421, %v420
  %v492 = vpack.c.b16 %v423, %v422
  %v493 = vpack.c.b16 %v425, %v424
  %v494 = vpack.c.b16 %v427, %v426
  %v495 = vpack.c.b16 %v429, %v428
  %v496 = vpack.c.b16 %v431, %v430
  %v497 = vpack.c.b16 %v433, %v432
  %v578 = vunpack.c.l.b16 %v155
  %v579 = vunpack.c.l.b16 %v156
  %v580 = vunpack.c.l.b16 %v157
  %v581 = vunpack.c.l.b16 %v158
  %v582 = vunpack.c.l.b16 %v159
  %v583 = vunpack.c.l.b16 %v160
  %v584 = vunpack.c.l.b16 %v161
  %v585 = vunpack.c.l.b16 %v162
  %v586 = vunpack.c.l.b16 %v163
  %v587 = vunpack.c.l.b16 %v164
  %v588 = vunpack.c.l.b16 %v165
  %v589 = vunpack.c.l.b16 %v166
  %v590 = vunpack.c.l.b16 %v167
  %v591 = vunpack.c.l.b16 %v168
  %v592 = vunpack.c.l.b16 %v169
  %v593 = vunpack.c.l.b16 %v170
  %v594 = vpack.c.b16 %v579, %v578
  %v595 = vpack.c.b16 %v581, %v580
  %v596 = vpack.c.b16 %v583, %v582
  %v597 = vpack.c.b16 %v585, %v584
  %v598 = vpack.c.b16 %v587, %v586
  %v599 = vpack.c.b16 %v589, %v588
  %v600 = vpack.c.b16 %v591, %v590
  %v601 = vpack.c.b16 %v593, %v592
  %610 = vmatprep.subr.bf16.mxu0 0
  %611 = vmatpush1.bf16.msra.mxu0 %v601
  %612 = vmatprep.subr.bf16.mxu0 0
  %613 = vmatpush1.bf16.msra.mxu0 %v600
  %614 = vmatprep.subr.bf16.mxu0 0
  %615 = vmatpush1.bf16.msra.mxu0 %v599
  %616 = vmatprep.subr.bf16.mxu0 0
  %617 = vmatpush1.bf16.msra.mxu0 %v598
  %618 = vmatprep.subr.bf16.mxu0 0
  %619 = vmatpush1.bf16.msra.mxu0 %v597
  %620 = vmatprep.subr.bf16.mxu0 0
  %621 = vmatpush1.bf16.msra.mxu0 %v596
  %622 = vmatprep.subr.bf16.mxu0 0
  %623 = vmatpush1.bf16.msra.mxu0 %v595
  %624 = vmatprep.subr.bf16.mxu0 0
  %625 = vmatpush1.bf16.msra.mxu0 %v594
  %626 = vmatprep.subr.bf16.mxu0 0
  %627 = vmatpush2.bf16.msra.mxu0 0
  %628 = vmatprep.subr.bf16.mxu0 0
  %629 = vmatpush2.bf16.msra.mxu0 0
  %630 = vmatprep.subr.bf16.mxu0 0
  %631 = vmatpush2.bf16.msra.mxu0 0
  %632 = vmatprep.subr.bf16.mxu0 0
  %633 = vmatpush2.bf16.msra.mxu0 0
  %634 = vmatprep.subr.bf16.mxu0 0
  %635 = vmatpush2.bf16.msra.mxu0 0
  %636 = vmatprep.subr.bf16.mxu0 0
  %637 = vmatpush2.bf16.msra.mxu0 0
  %638 = vmatprep.subr.bf16.mxu0 0
  %639 = vmatpush2.bf16.msra.mxu0 0
  %640 = vmatprep.subr.bf16.mxu0 0
  %641 = vmatpush2.bf16.msra.mxu0 0
  %642 = vmatprep.mubr.bf16.mxu0 0
  %643 = vmatmul.mubr.bf16.gmra.mxu0 %v434
  %v644 = vpop.f32.mrf.mxu0
  %v645 = vadd.f32 %v176, %v644
  %v646 = vpop.f32.mrf.mxu0
  %v647 = vpop.f32.mrf.mxu0
  %v648 = vadd.f32 %v176, %v647
  %v649 = vpop.f32.mrf.mxu0
  %650 = vmatprep.mubr.bf16.mxu0 0
  %651 = vmatmul.mubr.bf16.gmra.mxu0 %v435
  %v652 = vpop.f32.mrf.mxu0
  %v653 = vadd.f32 %v176, %v652
  %v654 = vpop.f32.mrf.mxu0
  %v655 = vpop.f32.mrf.mxu0
  %v656 = vadd.f32 %v176, %v655
  %v657 = vpop.f32.mrf.mxu0
  %658 = vmatprep.mubr.bf16.mxu0 0
  %659 = vmatmul.mubr.bf16.gmra.mxu0 %v436
  %v660 = vpop.f32.mrf.mxu0
  %v661 = vadd.f32 %v176, %v660
  %v662 = vpop.f32.mrf.mxu0
  %v663 = vpop.f32.mrf.mxu0
  %v664 = vadd.f32 %v176, %v663
  %v665 = vpop.f32.mrf.mxu0
  %666 = vmatprep.mubr.bf16.mxu0 0
  %667 = vmatmul.mubr.bf16.gmra.mxu0 %v437
  %v668 = vpop.f32.mrf.mxu0
  %v669 = vadd.f32 %v176, %v668
  %v670 = vpop.f32.mrf.mxu0
  %v671 = vpop.f32.mrf.mxu0
  %v672 = vadd.f32 %v176, %v671
  %v673 = vpop.f32.mrf.mxu0
  %674 = vmatprep.mubr.bf16.mxu0 0
  %675 = vmatmul.mubr.bf16.gmra.mxu0 %v438
  %v676 = vpop.f32.mrf.mxu0
  %v677 = vadd.f32 %v176, %v676
  %v678 = vpop.f32.mrf.mxu0
  %v679 = vpop.f32.mrf.mxu0
  %v680 = vadd.f32 %v176, %v679
  %v681 = vpop.f32.mrf.mxu0
  %682 = vmatprep.mubr.bf16.mxu0 0
  %683 = vmatmul.mubr.bf16.gmra.mxu0 %v439
  %v684 = vpop.f32.mrf.mxu0
  %v685 = vadd.f32 %v176, %v684
  %v686 = vpop.f32.mrf.mxu0
  %v687 = vpop.f32.mrf.mxu0
  %v688 = vadd.f32 %v176, %v687
  %v689 = vpop.f32.mrf.mxu0
  %690 = vmatprep.mubr.bf16.mxu0 0
  %691 = vmatmul.mubr.bf16.gmra.mxu0 %v440
  %v692 = vpop.f32.mrf.mxu0
  %v693 = vadd.f32 %v176, %v692
  %v694 = vpop.f32.mrf.mxu0
  %v695 = vpop.f32.mrf.mxu0
  %v696 = vadd.f32 %v176, %v695
  %v697 = vpop.f32.mrf.mxu0
  %698 = vmatprep.mubr.bf16.mxu0 0
  %699 = vmatmul.mubr.bf16.gmra.mxu0 %v441
  %v700 = vpop.f32.mrf.mxu0
  %v701 = vadd.f32 %v176, %v700
  %v702 = vpop.f32.mrf.mxu0
  %v703 = vpop.f32.mrf.mxu0
  %v704 = vadd.f32 %v176, %v703
  %v705 = vpop.f32.mrf.mxu0
  %706 = vmatprep.mubr.bf16.mxu0 0
  %707 = vmatmul.mubr.bf16.gmra.mxu0 %v442
  %v708 = vpop.f32.mrf.mxu0
  %v709 = vadd.f32 %v176, %v708
  %v710 = vpop.f32.mrf.mxu0
  %v711 = vpop.f32.mrf.mxu0
  %v712 = vadd.f32 %v176, %v711
  %v713 = vpop.f32.mrf.mxu0
  %714 = vmatprep.mubr.bf16.mxu0 0
  %715 = vmatmul.mubr.bf16.gmra.mxu0 %v443
  %v716 = vpop.f32.mrf.mxu0
  %v717 = vadd.f32 %v176, %v716
  %v718 = vpop.f32.mrf.mxu0
  %v719 = vpop.f32.mrf.mxu0
  %v720 = vadd.f32 %v176, %v719
  %v721 = vpop.f32.mrf.mxu0
  %722 = vmatprep.mubr.bf16.mxu0 0
  %723 = vmatmul.mubr.bf16.gmra.mxu0 %v444
  %v724 = vpop.f32.mrf.mxu0
  %v725 = vadd.f32 %v176, %v724
  %v726 = vpop.f32.mrf.mxu0
  %v727 = vpop.f32.mrf.mxu0
  %v728 = vadd.f32 %v176, %v727
  %v729 = vpop.f32.mrf.mxu0
  %730 = vmatprep.mubr.bf16.mxu0 0
  %731 = vmatmul.mubr.bf16.gmra.mxu0 %v445
  %v732 = vpop.f32.mrf.mxu0
  %v733 = vadd.f32 %v176, %v732
  %v734 = vpop.f32.mrf.mxu0
  %v735 = vpop.f32.mrf.mxu0
  %v736 = vadd.f32 %v176, %v735
  %v737 = vpop.f32.mrf.mxu0
  %738 = vmatprep.mubr.bf16.mxu0 0
  %739 = vmatmul.mubr.bf16.gmra.mxu0 %v446
  %v740 = vpop.f32.mrf.mxu0
  %v741 = vadd.f32 %v176, %v740
  %v742 = vpop.f32.mrf.mxu0
  %v743 = vpop.f32.mrf.mxu0
  %v744 = vadd.f32 %v176, %v743
  %v745 = vpop.f32.mrf.mxu0
  %746 = vmatprep.mubr.bf16.mxu0 0
  %747 = vmatmul.mubr.bf16.gmra.mxu0 %v447
  %v748 = vpop.f32.mrf.mxu0
  %v749 = vadd.f32 %v176, %v748
  %v750 = vpop.f32.mrf.mxu0
  %v751 = vpop.f32.mrf.mxu0
  %v752 = vadd.f32 %v176, %v751
  %v753 = vpop.f32.mrf.mxu0
  %754 = vmatprep.mubr.bf16.mxu0 0
  %755 = vmatmul.mubr.bf16.gmra.mxu0 %v448
  %v756 = vpop.f32.mrf.mxu0
  %v757 = vadd.f32 %v176, %v756
  %v758 = vpop.f32.mrf.mxu0
  %v759 = vpop.f32.mrf.mxu0
  %v760 = vadd.f32 %v176, %v759
  %v761 = vpop.f32.mrf.mxu0
  %762 = vmatprep.mubr.bf16.mxu0 0
  %763 = vmatmul.mubr.bf16.gmra.mxu0 %v449
  %v764 = vpop.f32.mrf.mxu0
  %v765 = vadd.f32 %v176, %v764
  %v766 = vpop.f32.mrf.mxu0
  %v767 = vpop.f32.mrf.mxu0
  %v768 = vadd.f32 %v176, %v767
  %v769 = vpop.f32.mrf.mxu0
  %770 = vmatprep.mubr.bf16.mxu0 0
  %771 = vmatmul.mubr.bf16.gmra.mxu0 %v450
  %v772 = vpop.f32.mrf.mxu0
  %v773 = vadd.f32 %v176, %v772
  %v774 = vpop.f32.mrf.mxu0
  %v775 = vpop.f32.mrf.mxu0
  %v776 = vadd.f32 %v176, %v775
  %v777 = vpop.f32.mrf.mxu0
  %778 = vmatprep.mubr.bf16.mxu0 0
  %779 = vmatmul.mubr.bf16.gmra.mxu0 %v451
  %v780 = vpop.f32.mrf.mxu0
  %v781 = vadd.f32 %v176, %v780
  %v782 = vpop.f32.mrf.mxu0
  %v783 = vpop.f32.mrf.mxu0
  %v784 = vadd.f32 %v176, %v783
  %v785 = vpop.f32.mrf.mxu0
  %786 = vmatprep.mubr.bf16.mxu0 0
  %787 = vmatmul.mubr.bf16.gmra.mxu0 %v452
  %v788 = vpop.f32.mrf.mxu0
  %v789 = vadd.f32 %v176, %v788
  %v790 = vpop.f32.mrf.mxu0
  %v791 = vpop.f32.mrf.mxu0
  %v792 = vadd.f32 %v176, %v791
  %v793 = vpop.f32.mrf.mxu0
  %794 = vmatprep.mubr.bf16.mxu0 0
  %795 = vmatmul.mubr.bf16.gmra.mxu0 %v453
  %v796 = vpop.f32.mrf.mxu0
  %v797 = vadd.f32 %v176, %v796
  %v798 = vpop.f32.mrf.mxu0
  %v799 = vpop.f32.mrf.mxu0
  %v800 = vadd.f32 %v176, %v799
  %v801 = vpop.f32.mrf.mxu0
  %802 = vmatprep.mubr.bf16.mxu0 0
  %803 = vmatmul.mubr.bf16.gmra.mxu0 %v454
  %v804 = vpop.f32.mrf.mxu0
  %v805 = vadd.f32 %v176, %v804
  %v806 = vpop.f32.mrf.mxu0
  %v807 = vpop.f32.mrf.mxu0
  %v808 = vadd.f32 %v176, %v807
  %v809 = vpop.f32.mrf.mxu0
  %810 = vmatprep.mubr.bf16.mxu0 0
  %811 = vmatmul.mubr.bf16.gmra.mxu0 %v455
  %v812 = vpop.f32.mrf.mxu0
  %v813 = vadd.f32 %v176, %v812
  %v814 = vpop.f32.mrf.mxu0
  %v815 = vpop.f32.mrf.mxu0
  %v816 = vadd.f32 %v176, %v815
  %v817 = vpop.f32.mrf.mxu0
  %818 = vmatprep.mubr.bf16.mxu0 0
  %819 = vmatmul.mubr.bf16.gmra.mxu0 %v456
  %v820 = vpop.f32.mrf.mxu0
  %v821 = vadd.f32 %v176, %v820
  %v822 = vpop.f32.mrf.mxu0
  %v823 = vpop.f32.mrf.mxu0
  %v824 = vadd.f32 %v176, %v823
  %v825 = vpop.f32.mrf.mxu0
  %826 = vmatprep.mubr.bf16.mxu0 0
  %827 = vmatmul.mubr.bf16.gmra.mxu0 %v457
  %v828 = vpop.f32.mrf.mxu0
  %v829 = vadd.f32 %v176, %v828
  %v830 = vpop.f32.mrf.mxu0
  %v831 = vpop.f32.mrf.mxu0
  %v832 = vadd.f32 %v176, %v831
  %v833 = vpop.f32.mrf.mxu0
  %834 = vmatprep.mubr.bf16.mxu0 0
  %835 = vmatmul.mubr.bf16.gmra.mxu0 %v458
  %v836 = vpop.f32.mrf.mxu0
  %v837 = vadd.f32 %v176, %v836
  %v838 = vpop.f32.mrf.mxu0
  %v839 = vpop.f32.mrf.mxu0
  %v840 = vadd.f32 %v176, %v839
  %v841 = vpop.f32.mrf.mxu0
  %842 = vmatprep.mubr.bf16.mxu0 0
  %843 = vmatmul.mubr.bf16.gmra.mxu0 %v459
  %v844 = vpop.f32.mrf.mxu0
  %v845 = vadd.f32 %v176, %v844
  %v846 = vpop.f32.mrf.mxu0
  %v847 = vpop.f32.mrf.mxu0
  %v848 = vadd.f32 %v176, %v847
  %v849 = vpop.f32.mrf.mxu0
  %850 = vmatprep.mubr.bf16.mxu0 0
  %851 = vmatmul.mubr.bf16.gmra.mxu0 %v460
  %v852 = vpop.f32.mrf.mxu0
  %v853 = vadd.f32 %v176, %v852
  %v854 = vpop.f32.mrf.mxu0
  %v855 = vpop.f32.mrf.mxu0
  %v856 = vadd.f32 %v176, %v855
  %v857 = vpop.f32.mrf.mxu0
  %858 = vmatprep.mubr.bf16.mxu0 0
  %859 = vmatmul.mubr.bf16.gmra.mxu0 %v461
  %v860 = vpop.f32.mrf.mxu0
  %v861 = vadd.f32 %v176, %v860
  %v862 = vpop.f32.mrf.mxu0
  %v863 = vpop.f32.mrf.mxu0
  %v864 = vadd.f32 %v176, %v863
  %v865 = vpop.f32.mrf.mxu0
  %866 = vmatprep.mubr.bf16.mxu0 0
  %867 = vmatmul.mubr.bf16.gmra.mxu0 %v462
  %v868 = vpop.f32.mrf.mxu0
  %v869 = vadd.f32 %v176, %v868
  %v870 = vpop.f32.mrf.mxu0
  %v871 = vpop.f32.mrf.mxu0
  %v872 = vadd.f32 %v176, %v871
  %v873 = vpop.f32.mrf.mxu0
  %874 = vmatprep.mubr.bf16.mxu0 0
  %875 = vmatmul.mubr.bf16.gmra.mxu0 %v463
  %v876 = vpop.f32.mrf.mxu0
  %v877 = vadd.f32 %v176, %v876
  %v878 = vpop.f32.mrf.mxu0
  %v879 = vpop.f32.mrf.mxu0
  %v880 = vadd.f32 %v176, %v879
  %v881 = vpop.f32.mrf.mxu0
  %882 = vmatprep.mubr.bf16.mxu0 0
  %883 = vmatmul.mubr.bf16.gmra.mxu0 %v464
  %v884 = vpop.f32.mrf.mxu0
  %v885 = vadd.f32 %v176, %v884
  %v886 = vpop.f32.mrf.mxu0
  %v887 = vpop.f32.mrf.mxu0
  %v888 = vadd.f32 %v176, %v887
  %v889 = vpop.f32.mrf.mxu0
  %890 = vmatprep.mubr.bf16.mxu0 0
  %891 = vmatmul.mubr.bf16.gmra.mxu0 %v465
  %v892 = vpop.f32.mrf.mxu0
  %v893 = vadd.f32 %v176, %v892
  %v894 = vpop.f32.mrf.mxu0
  %v895 = vpop.f32.mrf.mxu0
  %v896 = vadd.f32 %v176, %v895
  %v897 = vpop.f32.mrf.mxu0
  %898 = vmatprep.mubr.bf16.mxu0 0
  %899 = vmatmul.mubr.bf16.gmra.mxu0 %v466
  %v900 = vpop.f32.mrf.mxu0
  %v901 = vadd.f32 %v176, %v900
  %v902 = vpop.f32.mrf.mxu0
  %v903 = vpop.f32.mrf.mxu0
  %v904 = vadd.f32 %v176, %v903
  %v905 = vpop.f32.mrf.mxu0
  %906 = vmatprep.mubr.bf16.mxu0 0
  %907 = vmatmul.mubr.bf16.gmra.mxu0 %v467
  %v908 = vpop.f32.mrf.mxu0
  %v909 = vadd.f32 %v176, %v908
  %v910 = vpop.f32.mrf.mxu0
  %v911 = vpop.f32.mrf.mxu0
  %v912 = vadd.f32 %v176, %v911
  %v913 = vpop.f32.mrf.mxu0
  %914 = vmatprep.mubr.bf16.mxu0 0
  %915 = vmatmul.mubr.bf16.gmra.mxu0 %v468
  %v916 = vpop.f32.mrf.mxu0
  %v917 = vadd.f32 %v176, %v916
  %v918 = vpop.f32.mrf.mxu0
  %v919 = vpop.f32.mrf.mxu0
  %v920 = vadd.f32 %v176, %v919
  %v921 = vpop.f32.mrf.mxu0
  %922 = vmatprep.mubr.bf16.mxu0 0
  %923 = vmatmul.mubr.bf16.gmra.mxu0 %v469
  %v924 = vpop.f32.mrf.mxu0
  %v925 = vadd.f32 %v176, %v924
  %v926 = vpop.f32.mrf.mxu0
  %v927 = vpop.f32.mrf.mxu0
  %v928 = vadd.f32 %v176, %v927
  %v929 = vpop.f32.mrf.mxu0
  %930 = vmatprep.mubr.bf16.mxu0 0
  %931 = vmatmul.mubr.bf16.gmra.mxu0 %v470
  %v932 = vpop.f32.mrf.mxu0
  %v933 = vadd.f32 %v176, %v932
  %v934 = vpop.f32.mrf.mxu0
  %v935 = vpop.f32.mrf.mxu0
  %v936 = vadd.f32 %v176, %v935
  %v937 = vpop.f32.mrf.mxu0
  %938 = vmatprep.mubr.bf16.mxu0 0
  %939 = vmatmul.mubr.bf16.gmra.mxu0 %v471
  %v940 = vpop.f32.mrf.mxu0
  %v941 = vadd.f32 %v176, %v940
  %v942 = vpop.f32.mrf.mxu0
  %v943 = vpop.f32.mrf.mxu0
  %v944 = vadd.f32 %v176, %v943
  %v945 = vpop.f32.mrf.mxu0
  %946 = vmatprep.mubr.bf16.mxu0 0
  %947 = vmatmul.mubr.bf16.gmra.mxu0 %v472
  %v948 = vpop.f32.mrf.mxu0
  %v949 = vadd.f32 %v176, %v948
  %v950 = vpop.f32.mrf.mxu0
  %v951 = vpop.f32.mrf.mxu0
  %v952 = vadd.f32 %v176, %v951
  %v953 = vpop.f32.mrf.mxu0
  %954 = vmatprep.mubr.bf16.mxu0 0
  %955 = vmatmul.mubr.bf16.gmra.mxu0 %v473
  %v956 = vpop.f32.mrf.mxu0
  %v957 = vadd.f32 %v176, %v956
  %v958 = vpop.f32.mrf.mxu0
  %v959 = vpop.f32.mrf.mxu0
  %v960 = vadd.f32 %v176, %v959
  %v961 = vpop.f32.mrf.mxu0
  %962 = vmatprep.mubr.bf16.mxu0 0
  %963 = vmatmul.mubr.bf16.gmra.mxu0 %v474
  %v964 = vpop.f32.mrf.mxu0
  %v965 = vadd.f32 %v176, %v964
  %v966 = vpop.f32.mrf.mxu0
  %v967 = vpop.f32.mrf.mxu0
  %v968 = vadd.f32 %v176, %v967
  %v969 = vpop.f32.mrf.mxu0
  %970 = vmatprep.mubr.bf16.mxu0 0
  %971 = vmatmul.mubr.bf16.gmra.mxu0 %v475
  %v972 = vpop.f32.mrf.mxu0
  %v973 = vadd.f32 %v176, %v972
  %v974 = vpop.f32.mrf.mxu0
  %v975 = vpop.f32.mrf.mxu0
  %v976 = vadd.f32 %v176, %v975
  %v977 = vpop.f32.mrf.mxu0
  %978 = vmatprep.mubr.bf16.mxu0 0
  %979 = vmatmul.mubr.bf16.gmra.mxu0 %v476
  %v980 = vpop.f32.mrf.mxu0
  %v981 = vadd.f32 %v176, %v980
  %v982 = vpop.f32.mrf.mxu0
  %v983 = vpop.f32.mrf.mxu0
  %v984 = vadd.f32 %v176, %v983
  %v985 = vpop.f32.mrf.mxu0
  %986 = vmatprep.mubr.bf16.mxu0 0
  %987 = vmatmul.mubr.bf16.gmra.mxu0 %v477
  %v988 = vpop.f32.mrf.mxu0
  %v989 = vadd.f32 %v176, %v988
  %v990 = vpop.f32.mrf.mxu0
  %v991 = vpop.f32.mrf.mxu0
  %v992 = vadd.f32 %v176, %v991
  %v993 = vpop.f32.mrf.mxu0
  %994 = vmatprep.mubr.bf16.mxu0 0
  %995 = vmatmul.mubr.bf16.gmra.mxu0 %v478
  %v996 = vpop.f32.mrf.mxu0
  %v997 = vadd.f32 %v176, %v996
  %v998 = vpop.f32.mrf.mxu0
  %v999 = vpop.f32.mrf.mxu0
  %v1000 = vadd.f32 %v176, %v999
  %v1001 = vpop.f32.mrf.mxu0
  %1002 = vmatprep.mubr.bf16.mxu0 0
  %1003 = vmatmul.mubr.bf16.gmra.mxu0 %v479
  %v1004 = vpop.f32.mrf.mxu0
  %v1005 = vadd.f32 %v176, %v1004
  %v1006 = vpop.f32.mrf.mxu0
  %v1007 = vpop.f32.mrf.mxu0
  %v1008 = vadd.f32 %v176, %v1007
  %v1009 = vpop.f32.mrf.mxu0
  %1010 = vmatprep.mubr.bf16.mxu0 0
  %1011 = vmatmul.mubr.bf16.gmra.mxu0 %v480
  %v1012 = vpop.f32.mrf.mxu0
  %v1013 = vadd.f32 %v176, %v1012
  %v1014 = vpop.f32.mrf.mxu0
  %v1015 = vpop.f32.mrf.mxu0
  %v1016 = vadd.f32 %v176, %v1015
  %v1017 = vpop.f32.mrf.mxu0
  %1018 = vmatprep.mubr.bf16.mxu0 0
  %1019 = vmatmul.mubr.bf16.gmra.mxu0 %v481
  %v1020 = vpop.f32.mrf.mxu0
  %v1021 = vadd.f32 %v176, %v1020
  %v1022 = vpop.f32.mrf.mxu0
  %v1023 = vpop.f32.mrf.mxu0
  %v1024 = vadd.f32 %v176, %v1023
  %v1025 = vpop.f32.mrf.mxu0
  %1026 = vmatprep.mubr.bf16.mxu0 0
  %1027 = vmatmul.mubr.bf16.gmra.mxu0 %v482
  %v1028 = vpop.f32.mrf.mxu0
  %v1029 = vadd.f32 %v176, %v1028
  %v1030 = vpop.f32.mrf.mxu0
  %v1031 = vpop.f32.mrf.mxu0
  %v1032 = vadd.f32 %v176, %v1031
  %v1033 = vpop.f32.mrf.mxu0
  %1034 = vmatprep.mubr.bf16.mxu0 0
  %1035 = vmatmul.mubr.bf16.gmra.mxu0 %v483
  %v1036 = vpop.f32.mrf.mxu0
  %v1037 = vadd.f32 %v176, %v1036
  %v1038 = vpop.f32.mrf.mxu0
  %v1039 = vpop.f32.mrf.mxu0
  %v1040 = vadd.f32 %v176, %v1039
  %v1041 = vpop.f32.mrf.mxu0
  %1042 = vmatprep.mubr.bf16.mxu0 0
  %1043 = vmatmul.mubr.bf16.gmra.mxu0 %v484
  %v1044 = vpop.f32.mrf.mxu0
  %v1045 = vadd.f32 %v176, %v1044
  %v1046 = vpop.f32.mrf.mxu0
  %v1047 = vpop.f32.mrf.mxu0
  %v1048 = vadd.f32 %v176, %v1047
  %v1049 = vpop.f32.mrf.mxu0
  %1050 = vmatprep.mubr.bf16.mxu0 0
  %1051 = vmatmul.mubr.bf16.gmra.mxu0 %v485
  %v1052 = vpop.f32.mrf.mxu0
  %v1053 = vadd.f32 %v176, %v1052
  %v1054 = vpop.f32.mrf.mxu0
  %v1055 = vpop.f32.mrf.mxu0
  %v1056 = vadd.f32 %v176, %v1055
  %v1057 = vpop.f32.mrf.mxu0
  %1058 = vmatprep.mubr.bf16.mxu0 0
  %1059 = vmatmul.mubr.bf16.gmra.mxu0 %v486
  %v1060 = vpop.f32.mrf.mxu0
  %v1061 = vadd.f32 %v176, %v1060
  %v1062 = vpop.f32.mrf.mxu0
  %v1063 = vpop.f32.mrf.mxu0
  %v1064 = vadd.f32 %v176, %v1063
  %v1065 = vpop.f32.mrf.mxu0
  %1066 = vmatprep.mubr.bf16.mxu0 0
  %1067 = vmatmul.mubr.bf16.gmra.mxu0 %v487
  %v1068 = vpop.f32.mrf.mxu0
  %v1069 = vadd.f32 %v176, %v1068
  %v1070 = vpop.f32.mrf.mxu0
  %v1071 = vpop.f32.mrf.mxu0
  %v1072 = vadd.f32 %v176, %v1071
  %v1073 = vpop.f32.mrf.mxu0
  %1074 = vmatprep.mubr.bf16.mxu0 0
  %1075 = vmatmul.mubr.bf16.gmra.mxu0 %v488
  %v1076 = vpop.f32.mrf.mxu0
  %v1077 = vadd.f32 %v176, %v1076
  %v1078 = vpop.f32.mrf.mxu0
  %v1079 = vpop.f32.mrf.mxu0
  %v1080 = vadd.f32 %v176, %v1079
  %v1081 = vpop.f32.mrf.mxu0
  %1082 = vmatprep.mubr.bf16.mxu0 0
  %1083 = vmatmul.mubr.bf16.gmra.mxu0 %v489
  %v1084 = vpop.f32.mrf.mxu0
  %v1085 = vadd.f32 %v176, %v1084
  %v1086 = vpop.f32.mrf.mxu0
  %v1087 = vpop.f32.mrf.mxu0
  %v1088 = vadd.f32 %v176, %v1087
  %v1089 = vpop.f32.mrf.mxu0
  %1090 = vmatprep.mubr.bf16.mxu0 0
  %1091 = vmatmul.mubr.bf16.gmra.mxu0 %v490
  %v1092 = vpop.f32.mrf.mxu0
  %v1093 = vadd.f32 %v176, %v1092
  %v1094 = vpop.f32.mrf.mxu0
  %v1095 = vpop.f32.mrf.mxu0
  %v1096 = vadd.f32 %v176, %v1095
  %v1097 = vpop.f32.mrf.mxu0
  %1098 = vmatprep.mubr.bf16.mxu0 0
  %1099 = vmatmul.mubr.bf16.gmra.mxu0 %v491
  %v1100 = vpop.f32.mrf.mxu0
  %v1101 = vadd.f32 %v176, %v1100
  %v1102 = vpop.f32.mrf.mxu0
  %v1103 = vpop.f32.mrf.mxu0
  %v1104 = vadd.f32 %v176, %v1103
  %v1105 = vpop.f32.mrf.mxu0
  %1106 = vmatprep.mubr.bf16.mxu0 0
  %1107 = vmatmul.mubr.bf16.gmra.mxu0 %v492
  %v1108 = vpop.f32.mrf.mxu0
  %v1109 = vadd.f32 %v176, %v1108
  %v1110 = vpop.f32.mrf.mxu0
  %v1111 = vpop.f32.mrf.mxu0
  %v1112 = vadd.f32 %v176, %v1111
  %v1113 = vpop.f32.mrf.mxu0
  %1114 = vmatprep.mubr.bf16.mxu0 0
  %1115 = vmatmul.mubr.bf16.gmra.mxu0 %v493
  %v1116 = vpop.f32.mrf.mxu0
  %v1117 = vadd.f32 %v176, %v1116
  %v1118 = vpop.f32.mrf.mxu0
  %v1119 = vpop.f32.mrf.mxu0
  %v1120 = vadd.f32 %v176, %v1119
  %v1121 = vpop.f32.mrf.mxu0
  %1122 = vmatprep.mubr.bf16.mxu0 0
  %1123 = vmatmul.mubr.bf16.gmra.mxu0 %v494
  %v1124 = vpop.f32.mrf.mxu0
  %v1125 = vadd.f32 %v176, %v1124
  %v1126 = vpop.f32.mrf.mxu0
  %v1127 = vpop.f32.mrf.mxu0
  %v1128 = vadd.f32 %v176, %v1127
  %v1129 = vpop.f32.mrf.mxu0
  %1130 = vmatprep.mubr.bf16.mxu0 0
  %1131 = vmatmul.mubr.bf16.gmra.mxu0 %v495
  %v1132 = vpop.f32.mrf.mxu0
  %v1133 = vadd.f32 %v176, %v1132
  %v1134 = vpop.f32.mrf.mxu0
  %v1135 = vpop.f32.mrf.mxu0
  %v1136 = vadd.f32 %v176, %v1135
  %v1137 = vpop.f32.mrf.mxu0
  %1138 = vmatprep.mubr.bf16.mxu0 0
  %1139 = vmatmul.mubr.bf16.gmra.mxu0 %v496
  %v1140 = vpop.f32.mrf.mxu0
  %v1141 = vadd.f32 %v176, %v1140
  %v1142 = vpop.f32.mrf.mxu0
  %v1143 = vpop.f32.mrf.mxu0
  %v1144 = vadd.f32 %v176, %v1143
  %v1145 = vpop.f32.mrf.mxu0
  %1146 = vmatprep.mubr.bf16.mxu0 0
  %1147 = vmatmul.mubr.bf16.gmra.mxu0 %v497
  %v1148 = vpop.f32.mrf.mxu0
  %v1149 = vadd.f32 %v176, %v1148
  %v1150 = vpop.f32.mrf.mxu0
  %v1151 = vpop.f32.mrf.mxu0
  %v1152 = vadd.f32 %v176, %v1151
  %v1153 = vpop.f32.mrf.mxu0
  %1154 = vdwg.mxu0
  %v1155 = vmax.f32 %v645, 0.0
  %v1156 = vmax.f32 %v648, 0.0
  %v1157 = vmax.f32 %v653, 0.0
  %v1158 = vmax.f32 %v656, 0.0
  %v1159 = vmax.f32 %v661, 0.0
  %v1160 = vmax.f32 %v664, 0.0
  %v1161 = vmax.f32 %v669, 0.0
  %v1162 = vmax.f32 %v672, 0.0
  %v1163 = vmax.f32 %v677, 0.0
  %v1164 = vmax.f32 %v680, 0.0
  %v1165 = vmax.f32 %v685, 0.0
  %v1166 = vmax.f32 %v688, 0.0
  %v1167 = vmax.f32 %v693, 0.0
  %v1168 = vmax.f32 %v696, 0.0
  %v1169 = vmax.f32 %v701, 0.0
  %v1170 = vmax.f32 %v704, 0.0
  %v1171 = vmax.f32 %v709, 0.0
  %v1172 = vmax.f32 %v712, 0.0
  %v1173 = vmax.f32 %v717, 0.0
  %v1174 = vmax.f32 %v720, 0.0
  %v1175 = vmax.f32 %v725, 0.0
  %v1176 = vmax.f32 %v728, 0.0
  %v1177 = vmax.f32 %v733, 0.0
  %v1178 = vmax.f32 %v736, 0.0
  %v1179 = vmax.f32 %v741, 0.0
  %v1180 = vmax.f32 %v744, 0.0
  %v1181 = vmax.f32 %v749, 0.0
  %v1182 = vmax.f32 %v752, 0.0
  %v1183 = vmax.f32 %v757, 0.0
  %v1184 = vmax.f32 %v760, 0.0
  %v1185 = vmax.f32 %v765, 0.0
  %v1186 = vmax.f32 %v768, 0.0
  %v1187 = vmax.f32 %v773, 0.0
  %v1188 = vmax.f32 %v776, 0.0
  %v1189 = vmax.f32 %v781, 0.0
  %v1190 = vmax.f32 %v784, 0.0
  %v1191 = vmax.f32 %v789, 0.0
  %v1192 = vmax.f32 %v792, 0.0
  %v1193 = vmax.f32 %v797, 0.0
  %v1194 = vmax.f32 %v800, 0.0
  %v1195 = vmax.f32 %v805, 0.0
  %v1196 = vmax.f32 %v808, 0.0
  %v1197 = vmax.f32 %v813, 0.0
  %v1198 = vmax.f32 %v816, 0.0
  %v1199 = vmax.f32 %v821, 0.0
  %v1200 = vmax.f32 %v824, 0.0
  %v1201 = vmax.f32 %v829, 0.0
  %v1202 = vmax.f32 %v832, 0.0
  %v1203 = vmax.f32 %v837, 0.0
  %v1204 = vmax.f32 %v840, 0.0
  %v1205 = vmax.f32 %v845, 0.0
  %v1206 = vmax.f32 %v848, 0.0
  %v1207 = vmax.f32 %v853, 0.0
  %v1208 = vmax.f32 %v856, 0.0
  %v1209 = vmax.f32 %v861, 0.0
  %v1210 = vmax.f32 %v864, 0.0
  %v1211 = vmax.f32 %v869, 0.0
  %v1212 = vmax.f32 %v872, 0.0
  %v1213 = vmax.f32 %v877, 0.0
  %v1214 = vmax.f32 %v880, 0.0
  %v1215 = vmax.f32 %v885, 0.0
  %v1216 = vmax.f32 %v888, 0.0
  %v1217 = vmax.f32 %v893, 0.0
  %v1218 = vmax.f32 %v896, 0.0
  %v1219 = vmax.f32 %v901, 0.0
  %v1220 = vmax.f32 %v904, 0.0
  %v1221 = vmax.f32 %v909, 0.0
  %v1222 = vmax.f32 %v912, 0.0
  %v1223 = vmax.f32 %v917, 0.0
  %v1224 = vmax.f32 %v920, 0.0
  %v1225 = vmax.f32 %v925, 0.0
  %v1226 = vmax.f32 %v928, 0.0
  %v1227 = vmax.f32 %v933, 0.0
  %v1228 = vmax.f32 %v936, 0.0
  %v1229 = vmax.f32 %v941, 0.0
  %v1230 = vmax.f32 %v944, 0.0
  %v1231 = vmax.f32 %v949, 0.0
  %v1232 = vmax.f32 %v952, 0.0
  %v1233 = vmax.f32 %v957, 0.0
  %v1234 = vmax.f32 %v960, 0.0
  %v1235 = vmax.f32 %v965, 0.0
  %v1236 = vmax.f32 %v968, 0.0
  %v1237 = vmax.f32 %v973, 0.0
  %v1238 = vmax.f32 %v976, 0.0
  %v1239 = vmax.f32 %v981, 0.0
  %v1240 = vmax.f32 %v984, 0.0
  %v1241 = vmax.f32 %v989, 0.0
  %v1242 = vmax.f32 %v992, 0.0
  %v1243 = vmax.f32 %v997, 0.0
  %v1244 = vmax.f32 %v1000, 0.0
  %v1245 = vmax.f32 %v1005, 0.0
  %v1246 = vmax.f32 %v1008, 0.0
  %v1247 = vmax.f32 %v1013, 0.0
  %v1248 = vmax.f32 %v1016, 0.0
  %v1249 = vmax.f32 %v1021, 0.0
  %v1250 = vmax.f32 %v1024, 0.0
  %v1251 = vmax.f32 %v1029, 0.0
  %v1252 = vmax.f32 %v1032, 0.0
  %v1253 = vmax.f32 %v1037, 0.0
  %v1254 = vmax.f32 %v1040, 0.0
  %v1255 = vmax.f32 %v1045, 0.0
  %v1256 = vmax.f32 %v1048, 0.0
  %v1257 = vmax.f32 %v1053, 0.0
  %v1258 = vmax.f32 %v1056, 0.0
  %v1259 = vmax.f32 %v1061, 0.0
  %v1260 = vmax.f32 %v1064, 0.0
  %v1261 = vmax.f32 %v1069, 0.0
  %v1262 = vmax.f32 %v1072, 0.0
  %v1263 = vmax.f32 %v1077, 0.0
  %v1264 = vmax.f32 %v1080, 0.0
  %v1265 = vmax.f32 %v1085, 0.0
  %v1266 = vmax.f32 %v1088, 0.0
  %v1267 = vmax.f32 %v1093, 0.0
  %v1268 = vmax.f32 %v1096, 0.0
  %v1269 = vmax.f32 %v1101, 0.0
  %v1270 = vmax.f32 %v1104, 0.0
  %v1271 = vmax.f32 %v1109, 0.0
  %v1272 = vmax.f32 %v1112, 0.0
  %v1273 = vmax.f32 %v1117, 0.0
  %v1274 = vmax.f32 %v1120, 0.0
  %v1275 = vmax.f32 %v1125, 0.0
  %v1276 = vmax.f32 %v1128, 0.0
  %v1277 = vmax.f32 %v1133, 0.0
  %v1278 = vmax.f32 %v1136, 0.0
  %v1279 = vmax.f32 %v1141, 0.0
  %v1280 = vmax.f32 %v1144, 0.0
  %v1281 = vmax.f32 %v1149, 0.0
  %v1282 = vmax.f32 %v1152, 0.0
  %v1283 = vadd.f32 %v1155, %v1156
  %v1284 = vadd.f32 %v1283, %v1157
  %v1285 = vadd.f32 %v1284, %v1158
  %v1286 = vadd.f32 %v1285, %v1159
  %v1287 = vadd.f32 %v1286, %v1160
  %v1288 = vadd.f32 %v1287, %v1161
  %v1289 = vadd.f32 %v1288, %v1162
  %v1290 = vadd.f32 %v1289, %v1163
  %v1291 = vadd.f32 %v1290, %v1164
  %v1292 = vadd.f32 %v1291, %v1165
  %v1293 = vadd.f32 %v1292, %v1166
  %v1294 = vadd.f32 %v1293, %v1167
  %v1295 = vadd.f32 %v1294, %v1168
  %v1296 = vadd.f32 %v1295, %v1169
  %v1297 = vadd.f32 %v1296, %v1170
  %v1298 = vadd.f32 %v1297, %v1171
  %v1299 = vadd.f32 %v1298, %v1172
  %v1300 = vadd.f32 %v1299, %v1173
  %v1301 = vadd.f32 %v1300, %v1174
  %v1302 = vadd.f32 %v1301, %v1175
  %v1303 = vadd.f32 %v1302, %v1176
  %v1304 = vadd.f32 %v1303, %v1177
  %v1305 = vadd.f32 %v1304, %v1178
  %v1306 = vadd.f32 %v1305, %v1179
  %v1307 = vadd.f32 %v1306, %v1180
  %v1308 = vadd.f32 %v1307, %v1181
  %v1309 = vadd.f32 %v1308, %v1182
  %v1310 = vadd.f32 %v1309, %v1183
  %v1311 = vadd.f32 %v1310, %v1184
  %v1312 = vadd.f32 %v1311, %v1185
  %v1313 = vadd.f32 %v1312, %v1186
  %v1314 = vrot.slane %v1313, 4
  %v1315 = vadd.f32 %v1313, %v1314
  %v1316 = vrot.slane %v1315, 2
  %v1317 = vadd.f32 %v1315, %v1316
  %v1318 = vrot.slane %v1317, 1
  %v1319 = vadd.f32 %v1317, %v1318
  %v1320 = vadd.f32 %v1187, %v1188
  %v1321 = vadd.f32 %v1320, %v1189
  %v1322 = vadd.f32 %v1321, %v1190
  %v1323 = vadd.f32 %v1322, %v1191
  %v1324 = vadd.f32 %v1323, %v1192
  %v1325 = vadd.f32 %v1324, %v1193
  %v1326 = vadd.f32 %v1325, %v1194
  %v1327 = vadd.f32 %v1326, %v1195
  %v1328 = vadd.f32 %v1327, %v1196
  %v1329 = vadd.f32 %v1328, %v1197
  %v1330 = vadd.f32 %v1329, %v1198
  %v1331 = vadd.f32 %v1330, %v1199
  %v1332 = vadd.f32 %v1331, %v1200
  %v1333 = vadd.f32 %v1332, %v1201
  %v1334 = vadd.f32 %v1333, %v1202
  %v1335 = vadd.f32 %v1334, %v1203
  %v1336 = vadd.f32 %v1335, %v1204
  %v1337 = vadd.f32 %v1336, %v1205
  %v1338 = vadd.f32 %v1337, %v1206
  %v1339 = vadd.f32 %v1338, %v1207
  %v1340 = vadd.f32 %v1339, %v1208
  %v1341 = vadd.f32 %v1340, %v1209
  %v1342 = vadd.f32 %v1341, %v1210
  %v1343 = vadd.f32 %v1342, %v1211
  %v1344 = vadd.f32 %v1343, %v1212
  %v1345 = vadd.f32 %v1344, %v1213
  %v1346 = vadd.f32 %v1345, %v1214
  %v1347 = vadd.f32 %v1346, %v1215
  %v1348 = vadd.f32 %v1347, %v1216
  %v1349 = vadd.f32 %v1348, %v1217
  %v1350 = vadd.f32 %v1349, %v1218
  %v1351 = vrot.slane %v1350, 4
  %v1352 = vadd.f32 %v1350, %v1351
  %v1353 = vrot.slane %v1352, 2
  %v1354 = vadd.f32 %v1352, %v1353
  %v1355 = vrot.slane %v1354, 1
  %v1356 = vadd.f32 %v1354, %v1355
  %v1357 = vadd.f32 %v1219, %v1220
  %v1358 = vadd.f32 %v1357, %v1221
  %v1359 = vadd.f32 %v1358, %v1222
  %v1360 = vadd.f32 %v1359, %v1223
  %v1361 = vadd.f32 %v1360, %v1224
  %v1362 = vadd.f32 %v1361, %v1225
  %v1363 = vadd.f32 %v1362, %v1226
  %v1364 = vadd.f32 %v1363, %v1227
  %v1365 = vadd.f32 %v1364, %v1228
  %v1366 = vadd.f32 %v1365, %v1229
  %v1367 = vadd.f32 %v1366, %v1230
  %v1368 = vadd.f32 %v1367, %v1231
  %v1369 = vadd.f32 %v1368, %v1232
  %v1370 = vadd.f32 %v1369, %v1233
  %v1371 = vadd.f32 %v1370, %v1234
  %v1372 = vadd.f32 %v1371, %v1235
  %v1373 = vadd.f32 %v1372, %v1236
  %v1374 = vadd.f32 %v1373, %v1237
  %v1375 = vadd.f32 %v1374, %v1238
  %v1376 = vadd.f32 %v1375, %v1239
  %v1377 = vadd.f32 %v1376, %v1240
  %v1378 = vadd.f32 %v1377, %v1241
  %v1379 = vadd.f32 %v1378, %v1242
  %v1380 = vadd.f32 %v1379, %v1243
  %v1381 = vadd.f32 %v1380, %v1244
  %v1382 = vadd.f32 %v1381, %v1245
  %v1383 = vadd.f32 %v1382, %v1246
  %v1384 = vadd.f32 %v1383, %v1247
  %v1385 = vadd.f32 %v1384, %v1248
  %v1386 = vadd.f32 %v1385, %v1249
  %v1387 = vadd.f32 %v1386, %v1250
  %v1388 = vrot.slane %v1387, 4
  %v1389 = vadd.f32 %v1387, %v1388
  %v1390 = vrot.slane %v1389, 2
  %v1391 = vadd.f32 %v1389, %v1390
  %v1392 = vrot.slane %v1391, 1
  %v1393 = vadd.f32 %v1391, %v1392
  %v1394 = vadd.f32 %v1251, %v1252
  %v1395 = vadd.f32 %v1394, %v1253
  %v1396 = vadd.f32 %v1395, %v1254
  %v1397 = vadd.f32 %v1396, %v1255
  %v1398 = vadd.f32 %v1397, %v1256
  %v1399 = vadd.f32 %v1398, %v1257
  %v1400 = vadd.f32 %v1399, %v1258
  %v1401 = vadd.f32 %v1400, %v1259
  %v1402 = vadd.f32 %v1401, %v1260
  %v1403 = vadd.f32 %v1402, %v1261
  %v1404 = vadd.f32 %v1403, %v1262
  %v1405 = vadd.f32 %v1404, %v1263
  %v1406 = vadd.f32 %v1405, %v1264
  %v1407 = vadd.f32 %v1406, %v1265
  %v1408 = vadd.f32 %v1407, %v1266
  %v1409 = vadd.f32 %v1408, %v1267
  %v1410 = vadd.f32 %v1409, %v1268
  %v1411 = vadd.f32 %v1410, %v1269
  %v1412 = vadd.f32 %v1411, %v1270
  %v1413 = vadd.f32 %v1412, %v1271
  %v1414 = vadd.f32 %v1413, %v1272
  %v1415 = vadd.f32 %v1414, %v1273
  %v1416 = vadd.f32 %v1415, %v1274
  %v1417 = vadd.f32 %v1416, %v1275
  %v1418 = vadd.f32 %v1417, %v1276
  %v1419 = vadd.f32 %v1418, %v1277
  %v1420 = vadd.f32 %v1419, %v1278
  %v1421 = vadd.f32 %v1420, %v1279
  %v1422 = vadd.f32 %v1421, %v1280
  %v1423 = vadd.f32 %v1422, %v1281
  %v1424 = vadd.f32 %v1423, %v1282
  %v1425 = vrot.slane %v1424, 4
  %v1426 = vadd.f32 %v1424, %v1425
  %v1427 = vrot.slane %v1426, 2
  %v1428 = vadd.f32 %v1426, %v1427
  %v1429 = vrot.slane %v1428, 1
  %v1430 = vadd.f32 %v1428, %v1429
  %v1431 = vmul.f32 %v1319, 0.00390625
  %v1432 = vmul.f32 %v1356, 0.00390625
  %v1433 = vmul.f32 %v1393, 0.00390625
  %v1434 = vmul.f32 %v1430, 0.00390625
  %v1435 = vpack.c.bf16 %v1431, %v1431
  %v1436 = vpack.c.bf16 %v1432, %v1432
  %v1437 = vpack.c.bf16 %v1433, %v1433
  %v1438 = vpack.c.bf16 %v1434, %v1434
  %v1439 = vld [vmem:[%s3] sm:$0xf]
  %v1440 = vld [vmem:[%s3 + $0x4] sm:$0xf]
  %v1441 = vld [vmem:[%s3 + $0x8] sm:$0xf]
  %v1442 = vld [vmem:[%s3 + $0xc] sm:$0xf]
  %v1443 = vld [vmem:[%s3 + $0x10] sm:$0xf]
  %v1444 = vld [vmem:[%s3 + $0x14] sm:$0xf]
  %v1445 = vld [vmem:[%s3 + $0x18] sm:$0xf]
  %v1446 = vld [vmem:[%s3 + $0x1c] sm:$0xf]
  %v1447 = vld [vmem:[%s3 + $0x20] sm:$0xf]
  %v1448 = vld [vmem:[%s3 + $0x24] sm:$0xf]
  %v1449 = vld [vmem:[%s3 + $0x28] sm:$0xf]
  %v1450 = vld [vmem:[%s3 + $0x2c] sm:$0xf]
  %v1451 = vld [vmem:[%s3 + $0x30] sm:$0xf]
  %v1452 = vld [vmem:[%s3 + $0x34] sm:$0xf]
  %v1453 = vld [vmem:[%s3 + $0x38] sm:$0xf]
  %v1454 = vld [vmem:[%s3 + $0x3c] sm:$0xf]
  %v1455 = vld [vmem:[%s4] sm:$0x1]
  %v1457 = vlaneseq
  %v1458 = vshrl.u32 %v1457, 7
  %v1459 = vsub.s32 0, %v1458
  %v1460 = vrot.slane %v1455, %v1459
  %v1466 = vunpack.c.l.b16 %v1435
  %v1467 = vunpack.c.l.b16 %v1436
  %v1468 = vunpack.c.l.b16 %v1437
  %v1469 = vunpack.c.l.b16 %v1438
  %vm1470 = vcmask 1041409
  %v1471 = vsel %vm1470, %v1467, %v1466
  %vm1472 = vcmask 1042434
  %v1473 = vsel %vm1472, %v1468, %v1471
  %vm1474 = vcmask 1043459
  %v1475 = vsel %vm1474, %v1469, %v1473
  %v1476 = vpack.c.b16 %v1475, %v1475
  %v1494 = vunpack.c.l.b16 %v1439
  %v1495 = vunpack.c.l.b16 %v1440
  %v1496 = vunpack.c.l.b16 %v1441
  %v1497 = vunpack.c.l.b16 %v1442
  %v1498 = vunpack.c.l.b16 %v1443
  %v1499 = vunpack.c.l.b16 %v1444
  %v1500 = vunpack.c.l.b16 %v1445
  %v1501 = vunpack.c.l.b16 %v1446
  %v1502 = vunpack.c.l.b16 %v1447
  %v1503 = vunpack.c.l.b16 %v1448
  %v1504 = vunpack.c.l.b16 %v1449
  %v1505 = vunpack.c.l.b16 %v1450
  %v1506 = vunpack.c.l.b16 %v1451
  %v1507 = vunpack.c.l.b16 %v1452
  %v1508 = vunpack.c.l.b16 %v1453
  %v1509 = vunpack.c.l.b16 %v1454
  %v1510 = vpack.c.b16 %v1495, %v1494
  %v1511 = vpack.c.b16 %v1497, %v1496
  %v1512 = vpack.c.b16 %v1499, %v1498
  %v1513 = vpack.c.b16 %v1501, %v1500
  %v1514 = vpack.c.b16 %v1503, %v1502
  %v1515 = vpack.c.b16 %v1505, %v1504
  %v1516 = vpack.c.b16 %v1507, %v1506
  %v1517 = vpack.c.b16 %v1509, %v1508
  %1526 = vmatprep.subr.bf16.mxu0 0
  %1527 = vmatpush1.bf16.msra.mxu0 %v1517
  %1528 = vmatprep.subr.bf16.mxu0 0
  %1529 = vmatpush1.bf16.msra.mxu0 %v1516
  %1530 = vmatprep.subr.bf16.mxu0 0
  %1531 = vmatpush1.bf16.msra.mxu0 %v1515
  %1532 = vmatprep.subr.bf16.mxu0 0
  %1533 = vmatpush1.bf16.msra.mxu0 %v1514
  %1534 = vmatprep.subr.bf16.mxu0 0
  %1535 = vmatpush1.bf16.msra.mxu0 %v1513
  %1536 = vmatprep.subr.bf16.mxu0 0
  %1537 = vmatpush1.bf16.msra.mxu0 %v1512
  %1538 = vmatprep.subr.bf16.mxu0 0
  %1539 = vmatpush1.bf16.msra.mxu0 %v1511
  %1540 = vmatprep.subr.bf16.mxu0 0
  %1541 = vmatpush1.bf16.msra.mxu0 %v1510
  %1542 = vmatprep.subr.bf16.mxu0 0
  %1543 = vmatpush2.bf16.msra.mxu0 0
  %1544 = vmatprep.subr.bf16.mxu0 0
  %1545 = vmatpush2.bf16.msra.mxu0 0
  %1546 = vmatprep.subr.bf16.mxu0 0
  %1547 = vmatpush2.bf16.msra.mxu0 0
  %1548 = vmatprep.subr.bf16.mxu0 0
  %1549 = vmatpush2.bf16.msra.mxu0 0
  %1550 = vmatprep.subr.bf16.mxu0 0
  %1551 = vmatpush2.bf16.msra.mxu0 0
  %1552 = vmatprep.subr.bf16.mxu0 0
  %1553 = vmatpush2.bf16.msra.mxu0 0
  %1554 = vmatprep.subr.bf16.mxu0 0
  %1555 = vmatpush2.bf16.msra.mxu0 0
  %1556 = vmatprep.subr.bf16.mxu0 0
  %1557 = vmatpush2.bf16.msra.mxu0 0
  %1558 = vmatprep.mubr.bf16.mxu0 0
  %1559 = vmatmul.mubr.bf16.gmra.mxu0 %v1476
  %v1560 = vpop.f32.mrf.mxu0
  %v1561 = vadd.f32 %v1460, %v1560
  %v1562 = vpop.f32.mrf.mxu0
  %v1563 = vpop.f32.mrf.mxu0
  %v1564 = vpop.f32.mrf.mxu0
  %1565 = vdwg.mxu0
  %v1566 = vmax.f32 %v1561, 0.0
  %v1567 = vpack.c.bf16 %v1566, %v1566
  %v1568 = vld [vmem:[%s5] sm:$0xf]
  %v1569 = vld [vmem:[%s5 + $0x4] sm:$0xf]
  %v1570 = vld [vmem:[%s5 + $0x8] sm:$0xf]
  %v1571 = vld [vmem:[%s5 + $0xc] sm:$0xf]
  %v1572 = vld [vmem:[%s5 + $0x10] sm:$0xf]
  %v1573 = vld [vmem:[%s5 + $0x14] sm:$0xf]
  %v1574 = vld [vmem:[%s5 + $0x18] sm:$0xf]
  %v1575 = vld [vmem:[%s5 + $0x1c] sm:$0xf]
  %v1576 = vld [vmem:[%s5 + $0x20] sm:$0xf]
  %v1577 = vld [vmem:[%s5 + $0x24] sm:$0xf]
  %v1578 = vld [vmem:[%s5 + $0x28] sm:$0xf]
  %v1579 = vld [vmem:[%s5 + $0x2c] sm:$0xf]
  %v1580 = vld [vmem:[%s5 + $0x30] sm:$0xf]
  %v1581 = vld [vmem:[%s5 + $0x34] sm:$0xf]
  %v1582 = vld [vmem:[%s5 + $0x38] sm:$0xf]
  %v1583 = vld [vmem:[%s5 + $0x3c] sm:$0xf]
  %v1584 = vld [vmem:[%s6] sm:$0x1]
  %v1586 = vlaneseq
  %v1587 = vshrl.u32 %v1586, 7
  %v1588 = vsub.s32 0, %v1587
  %v1589 = vrot.slane %v1584, %v1588
  %v1607 = vunpack.c.l.b16 %v1568
  %v1608 = vunpack.c.l.b16 %v1569
  %v1609 = vunpack.c.l.b16 %v1570
  %v1610 = vunpack.c.l.b16 %v1571
  %v1611 = vunpack.c.l.b16 %v1572
  %v1612 = vunpack.c.l.b16 %v1573
  %v1613 = vunpack.c.l.b16 %v1574
  %v1614 = vunpack.c.l.b16 %v1575
  %v1615 = vunpack.c.l.b16 %v1576
  %v1616 = vunpack.c.l.b16 %v1577
  %v1617 = vunpack.c.l.b16 %v1578
  %v1618 = vunpack.c.l.b16 %v1579
  %v1619 = vunpack.c.l.b16 %v1580
  %v1620 = vunpack.c.l.b16 %v1581
  %v1621 = vunpack.c.l.b16 %v1582
  %v1622 = vunpack.c.l.b16 %v1583
  %v1623 = vpack.c.b16 %v1608, %v1607
  %v1624 = vpack.c.b16 %v1610, %v1609
  %v1625 = vpack.c.b16 %v1612, %v1611
  %v1626 = vpack.c.b16 %v1614, %v1613
  %v1627 = vpack.c.b16 %v1616, %v1615
  %v1628 = vpack.c.b16 %v1618, %v1617
  %v1629 = vpack.c.b16 %v1620, %v1619
  %v1630 = vpack.c.b16 %v1622, %v1621
  %1639 = vmatprep.subr.bf16.mxu0 0
  %1640 = vmatpush1.bf16.msra.mxu0 %v1630
  %1641 = vmatprep.subr.bf16.mxu0 0
  %1642 = vmatpush1.bf16.msra.mxu0 %v1629
  %1643 = vmatprep.subr.bf16.mxu0 0
  %1644 = vmatpush1.bf16.msra.mxu0 %v1628
  %1645 = vmatprep.subr.bf16.mxu0 0
  %1646 = vmatpush1.bf16.msra.mxu0 %v1627
  %1647 = vmatprep.subr.bf16.mxu0 0
  %1648 = vmatpush1.bf16.msra.mxu0 %v1626
  %1649 = vmatprep.subr.bf16.mxu0 0
  %1650 = vmatpush1.bf16.msra.mxu0 %v1625
  %1651 = vmatprep.subr.bf16.mxu0 0
  %1652 = vmatpush1.bf16.msra.mxu0 %v1624
  %1653 = vmatprep.subr.bf16.mxu0 0
  %1654 = vmatpush1.bf16.msra.mxu0 %v1623
  %1655 = vmatprep.subr.bf16.mxu0 0
  %1656 = vmatpush2.bf16.msra.mxu0 0
  %1657 = vmatprep.subr.bf16.mxu0 0
  %1658 = vmatpush2.bf16.msra.mxu0 0
  %1659 = vmatprep.subr.bf16.mxu0 0
  %1660 = vmatpush2.bf16.msra.mxu0 0
  %1661 = vmatprep.subr.bf16.mxu0 0
  %1662 = vmatpush2.bf16.msra.mxu0 0
  %1663 = vmatprep.subr.bf16.mxu0 0
  %1664 = vmatpush2.bf16.msra.mxu0 0
  %1665 = vmatprep.subr.bf16.mxu0 0
  %1666 = vmatpush2.bf16.msra.mxu0 0
  %1667 = vmatprep.subr.bf16.mxu0 0
  %1668 = vmatpush2.bf16.msra.mxu0 0
  %1669 = vmatprep.subr.bf16.mxu0 0
  %1670 = vmatpush2.bf16.msra.mxu0 0
  %1671 = vmatprep.mubr.bf16.mxu0 0
  %1672 = vmatmul.mubr.bf16.gmra.mxu0 %v1567
  %v1673 = vpop.f32.mrf.mxu0
  %v1674 = vadd.f32 %v1589, %v1673
  %v1675 = vpop.f32.mrf.mxu0
  %v1676 = vpop.f32.mrf.mxu0
  %v1677 = vpop.f32.mrf.mxu0
  %1678 = vdwg.mxu0
  %v1679 = vmax.f32 %v1674, 0.0
  %1680 = vst [vmem:[%s7] sm:$0xf] %v1566
  %1681 = vst [vmem:[%s7 + $0x4] sm:$0xf] %v1679
  // Predicated region
  $region30: #{network_forward.1} parent=0 // pred_check
    _
  $region31: #{network_forward.1} parent=0 // pred_check_branch
    %1683 = sbr.rel (0) target = $region33
  $region32: #{network_forward.1} parent=0 // pred_region
    _
  $region33: #{network_forward.1} parent=0 // pred_fallthru
    _
  // Predicated region
  $region34: #{network_forward.1} parent=0 // pred_check
    _
  $region35: #{network_forward.1} parent=0 // pred_check_branch
    %1685 = sbr.rel (0) target = $region37
  $region36: #{network_forward.1} parent=0 // pred_region
    _
  $region37: #{network_forward.1} parent=0 // pred_fallthru
    _

</llo_original>
